<compile_context>
chip_gen: v7x
topology: tpu7x:2x2x1
jax: 0.10.0
libtpu: 0.0.40
codegen_flags: <defaults>
</compile_context>

<pallas_src>
import jax
import jax.numpy as jnp
from jax import lax
from jax.experimental import pallas as pl
from jax.experimental.pallas import tpu as pltpu


# ----------------------------------------------------------------------------
# Hardware / tiling helpers
# ----------------------------------------------------------------------------
def _vmem_capacity_bytes():
    """Physical VMEM per core; conservative fallback = v7x (64 MiB)."""
    try:
        info = pltpu.get_tpu_info()
        cap = getattr(info, "vmem_capacity_bytes", None)
        if cap:
            return int(cap)
    except Exception:
        pass
    return 64 * 1024 * 1024


def _round_up(x, m):
    return ((x + m - 1) // m) * m


def _pick_tile_and_pad(dim, preferred, align):
    """Return (tile, padded_dim). Full-dim blocks are always legal; otherwise
    find an `align`-multiple divisor <= preferred, else pad to a tile multiple."""
    if dim <= preferred:
        return dim, dim
    t = (preferred // align) * align
    tt = t
    while tt >= align:
        if dim % tt == 0:
            return tt, dim
        tt -= align
    return t, _round_up(dim, t)


def _pick_batch_block(B):
    """Split batch across TensorCores (v7x) only when bf16 tiling stays legal."""
    if B >= 64 and B % 32 == 0:
        return B // 2
    return B


def _pick_t_chunk(S, B_blk, in_dim, H, vmem_cap):
    """Size the time chunk so double-buffered x/y chunks + gin scratch +
    single-buffered weights fit ~70% of physical VMEM; cap for unrolling."""
    budget = int(0.7 * vmem_cap)
    fixed = (in_dim * 4 * H + H * 4 * H) * 2          # bf16 weights, 1 buffer
    fixed += 8 * B_blk * H * 4                        # h0/c0 blocks + h/c scratch
    per_t = (2 * B_blk * in_dim * 2 +                 # x chunk, 2 buffers, bf16
             2 * B_blk * H * 2 +                      # y chunk, 2 buffers, bf16
             B_blk * 4 * H * 4)                       # gin scratch, f32
    avail = max(budget - fixed, per_t)
    t = int(max(1, min(S, avail // per_t, 32)))
    while S % t != 0:                                  # keep tiles exact (no tail)
        t -= 1
    return t


# ----------------------------------------------------------------------------
# Pallas kernels
# ----------------------------------------------------------------------------
def _linear_kernel(x_ref, w_ref, b_ref, o_ref):
    """o = x @ w + b (f32 accumulation). x:(tm,K) bf16, w:(K,tn) bf16,
    b:(1,tn) f32, o:(tm,tn)."""
    acc = jnp.dot(x_ref[...], w_ref[...], preferred_element_type=jnp.float32)
    o_ref[...] = (acc + b_ref[...]).astype(o_ref.dtype)


def _lstm_chunk_kernel(x_ref, h0_ref, c0_ref, w_ih_ref, w_hh_ref, b_ref,
                       y_ref, hN_ref, cN_ref,
                       gin_sc, h_sc, c_sc):
    """Fused LSTM layer over one time chunk of one batch block.

    x_ref   : (T, Bb, in_dim) bf16   layer input chunk
    h0_ref  : (Bb, H)  f32           initial hidden (used at first time chunk)
    c0_ref  : (Bb, H)  f32           initial cell
    w_ih_ref: (in_dim, 4H) bf16      input->gates weight (single-buffered)
    w_hh_ref: (H, 4H)  bf16          hidden->gates weight (single-buffered)
    b_ref   : (1, 4H)  f32           b_ih + b_hh (single-buffered)
    y_ref   : (T, Bb, H) bf16        per-step hidden outputs
    hN_ref  : (Bb, H)  f32           final hidden (written at last chunk)
    cN_ref  : (Bb, H)  f32           final cell
    gin_sc  : (T, Bb, 4H) f32        fused input projection scratch
    h_sc/c_sc: (Bb, H) f32           recurrent state carried across time chunks
    Gate order (pre-permuted at weight prep): i, f, o, g.
    """
    t_idx = pl.program_id(1)

    @pl.when(t_idx == 0)
    def _():
        h_sc[...] = h0_ref[...]
        c_sc[...] = c0_ref[...]

    T, B, in_dim = x_ref.shape
    H = h_sc.shape[-1]

    # Fused input projection for the whole chunk: one batched MXU matmul,
    # result stays in VMEM (no HBM round trip for G_in).
    x2d = x_ref[...].reshape(T * B, in_dim)
    gin = jnp.dot(x2d, w_ih_ref[...], preferred_element_type=jnp.float32)
    gin_sc[...] = (gin + b_ref[...]).reshape(T, B, 4 * H)

    def step(t, carry):
        h = h_sc[...]
        c = c_sc[...]
        gates = gin_sc[t] + jnp.dot(h.astype(w_hh_ref.dtype), w_hh_ref[...],
                                    preferred_element_type=jnp.float32)
        sig = jax.nn.sigmoid(gates[:, : 3 * H])        # i, f, o in one slab
        i_g = sig[:, 0 * H:1 * H]
        f_g = sig[:, 1 * H:2 * H]
        o_g = sig[:, 2 * H:3 * H]
        g_g = jnp.tanh(gates[:, 3 * H:4 * H])
        c_new = f_g * c + i_g * g_g
        h_new = o_g * jnp.tanh(c_new)
        h_sc[...] = h_new
        c_sc[...] = c_new
        y_ref[t] = h_new.astype(y_ref.dtype)
        return carry

    lax.fori_loop(0, T, step, 0, unroll=True)

    @pl.when(t_idx == pl.num_programs(1) - 1)
    def _():
        hN_ref[...] = h_sc[...]
        cN_ref[...] = c_sc[...]


# ----------------------------------------------------------------------------
# Pallas wrappers
# ----------------------------------------------------------------------------
def linear(x, w_t, b, out_dtype=jnp.float32, tm_pref=512, tn_pref=512):
    """Tiled x @ w_t + b. x:(M,K) bf16, w_t:(K,N) bf16, b:(1,N) f32."""
    M, K = x.shape
    N = w_t.shape[-1]
    tm, Mp = _pick_tile_and_pad(M, tm_pref, 16)    # bf16 rows -> 16-aligned
    tn, Np = _pick_tile_and_pad(N, tn_pref, 128)   # lane-aligned columns
    if Mp != M:
        x = jnp.pad(x, ((0, Mp - M), (0, 0)))
    if Np != N:
        w_t = jnp.pad(w_t, ((0, 0), (0, Np - N)))
        b = jnp.pad(b, ((0, 0), (0, Np - N)))
    cap = _vmem_capacity_bytes()
    out = pl.pallas_call(
        _linear_kernel,
        out_shape=jax.ShapeDtypeStruct((Mp, Np), out_dtype),
        grid=(Mp // tm, Np // tn),
        in_specs=[
            pl.BlockSpec((tm, K), lambda i, j: (i, 0)),
            pl.BlockSpec((K, tn), lambda i, j: (0, j)),
            pl.BlockSpec((1, tn), lambda i, j: (0, j)),
        ],
        out_specs=pl.BlockSpec((tm, tn), lambda i, j: (i, j)),
        compiler_params=pltpu.CompilerParams(
            dimension_semantics=("parallel", "parallel"),
            vmem_limit_bytes=int(0.9 * cap)),
    )(x, w_t, b)
    if Mp != M or Np != N:
        out = out[:M, :N]
    return out


def lstm_layer(x, h0, c0, w_ih_t, w_hh_t, b):
    """One fused LSTM layer over the full sequence.

    x: (S, B, in_dim) bf16; h0/c0: (B, H) f32; w_ih_t: (in_dim, 4H) bf16;
    w_hh_t: (H, 4H) bf16; b: (1, 4H) f32 — gates pre-permuted to [i, f, o, g].
    Returns (y (S,B,H) bf16, hN (B,H) f32, cN (B,H) f32)."""
    S, B, in_dim = x.shape
    H = h0.shape[-1]
    G4 = 4 * H
    cap = _vmem_capacity_bytes()
    B_blk = _pick_batch_block(B)
    t_chunk = _pick_t_chunk(S, B_blk, in_dim, H, cap)
    grid = (B // B_blk, S // t_chunk)
    buf1 = pl.Buffered(1)   # grid-invariant weights: no double-buffering

    return pl.pallas_call(
        _lstm_chunk_kernel,
        out_shape=(
            jax.ShapeDtypeStruct((S, B, H), jnp.bfloat16),   # y
            jax.ShapeDtypeStruct((B, H), jnp.float32),       # hN
            jax.ShapeDtypeStruct((B, H), jnp.float32),       # cN
        ),
        grid=grid,
        in_specs=[
            pl.BlockSpec((t_chunk, B_blk, in_dim), lambda bb, t: (t, bb, 0)),
            pl.BlockSpec((B_blk, H), lambda bb, t: (bb, 0)),
            pl.BlockSpec((B_blk, H), lambda bb, t: (bb, 0)),
            pl.BlockSpec((in_dim, G4), lambda bb, t: (0, 0), pipeline_mode=buf1),
            pl.BlockSpec((H, G4), lambda bb, t: (0, 0), pipeline_mode=buf1),
            pl.BlockSpec((1, G4), lambda bb, t: (0, 0), pipeline_mode=buf1),
        ],
        out_specs=(
            pl.BlockSpec((t_chunk, B_blk, H), lambda bb, t: (t, bb, 0)),
            pl.BlockSpec((B_blk, H), lambda bb, t: (bb, 0)),
            pl.BlockSpec((B_blk, H), lambda bb, t: (bb, 0)),
        ),
        scratch_shapes=[
            pltpu.VMEM((t_chunk, B_blk, G4), jnp.float32),   # fused gin chunk
            pltpu.VMEM((B_blk, H), jnp.float32),             # h carry
            pltpu.VMEM((B_blk, H), jnp.float32),             # c carry
        ],
        compiler_params=pltpu.CompilerParams(
            dimension_semantics=("parallel", "arbitrary"),
            vmem_limit_bytes=int(0.9 * cap)),
    )(x, h0, c0, w_ih_t, w_hh_t, b)


# ----------------------------------------------------------------------------
# Parameters (LSTM, adasoft=False, tie_weights=False)
# ----------------------------------------------------------------------------
def init_params(key, ntoken, ninp, nhid, nlayers):
    initrange = 0.1
    keys = jax.random.split(key, 1 + 4 * nlayers + 1)
    ki = iter(keys)
    params = {}
    # encoder.weight ~ U(-0.1, 0.1); stored bf16 (feeds the fused matmul)
    params["enc_w"] = jax.random.uniform(
        next(ki), (ntoken, ninp), jnp.float32, -initrange, initrange
    ).astype(jnp.bfloat16)

    H = nhid
    # PyTorch gate order is [i, f, g, o]; permute rows to [i, f, o, g] so the
    # three sigmoids act on one contiguous slab inside the kernel.
    perm = jnp.concatenate([jnp.arange(0, 2 * H),
                            jnp.arange(3 * H, 4 * H),
                            jnp.arange(2 * H, 3 * H)])
    params["lstm"] = []
    for layer in range(nlayers):
        in_dim = ninp if layer == 0 else nhid
        std = (1.0 / nhid) ** 0.5
        w_ih = jax.random.uniform(next(ki), (4 * H, in_dim), jnp.float32, -std, std)
        w_hh = jax.random.uniform(next(ki), (4 * H, H), jnp.float32, -std, std)
        b_ih = jax.random.uniform(next(ki), (4 * H,), jnp.float32, -std, std)
        b_hh = jax.random.uniform(next(ki), (4 * H,), jnp.float32, -std, std)
        params["lstm"].append({
            "w_ih_t": w_ih[perm].T.astype(jnp.bfloat16),   # (in_dim, 4H)
            "w_hh_t": w_hh[perm].T.astype(jnp.bfloat16),   # (H, 4H)
            "b": (b_ih + b_hh)[perm][None, :],              # (1, 4H) f32
        })

    # decoder: xavier-normal weight (ntoken, nhid), zero bias
    xavier_std = (2.0 / (nhid + ntoken)) ** 0.5
    dec_w = xavier_std * jax.random.normal(next(ki), (ntoken, nhid), jnp.float32)
    params["dec_w_t"] = dec_w.T.astype(jnp.bfloat16)        # (H, ntoken)
    params["dec_b"] = jnp.zeros((1, ntoken), jnp.float32)
    return params


# ----------------------------------------------------------------------------
# RNNModel forward (LSTM, adasoft=False)
# ----------------------------------------------------------------------------
@jax.jit
def rnn_model_forward(params, tokens, h0, c0):
    """tokens: (S, B) int32; h0, c0: (nlayers, B, H).
    Returns (decoded (S, B, ntoken) f32, (hN, cN))."""
    S, B = tokens.shape
    nlayers = h0.shape[0]

    # encoder (embedding gather) + embed dropout (identity in eval)
    x = params["enc_w"][tokens]                       # (S, B, ninp) bf16

    h_finals, c_finals = [], []
    for layer in range(nlayers):
        lp = params["lstm"][layer]
        y, h_n, c_n = lstm_layer(x, h0[layer], c0[layer],
                                 lp["w_ih_t"], lp["w_hh_t"], lp["b"])
        h_finals.append(h_n)
        c_finals.append(c_n)
        x = y                                          # inter-layer dropout = id

    # output_drop = identity; decoder Linear
    H = x.shape[-1]
    decoded_flat = linear(x.reshape(S * B, H),
                          params["dec_w_t"], params["dec_b"],
                          out_dtype=jnp.float32)       # (S*B, ntoken)
    decoded = decoded_flat.reshape(S, B, -1)
    hN = jnp.stack(h_finals, axis=0)
    cN = jnp.stack(c_finals, axis=0)
    return decoded, (hN, cN)


# ----------------------------------------------------------------------------
# Main
# ----------------------------------------------------------------------------
if __name__ == "__main__":
    ntoken, ninp, nhid, nlayers = 32, 32, 32, 2
    seq_len, batch = 8, 4

    key = jax.random.PRNGKey(0)
    k_param, k_tok = jax.random.split(key)
    params = init_params(k_param, ntoken, ninp, nhid, nlayers)

    tokens = jax.random.randint(k_tok, (seq_len, batch), 0, ntoken,
                                dtype=jnp.int32)
    # init_hidden(bsz): zeros for LSTM (h, c)
    h0 = jnp.zeros((nlayers, batch, nhid), jnp.float32)
    c0 = jnp.zeros((nlayers, batch, nhid), jnp.float32)

    decoded, (hN, cN) = rnn_model_forward(params, tokens, h0, c0)
    jax.block_until_ready((decoded, hN, cN))

    assert decoded.shape == (seq_len, batch, ntoken)
    assert decoded.dtype == jnp.float32
    assert hN.shape == (nlayers, batch, nhid)
    assert cN.shape == (nlayers, batch, nhid)
    assert bool(jnp.all(jnp.isfinite(decoded)))
    print("KERNEL_OK")
</pallas_src>

<mosaic_0001>
module attributes {stable_mosaic.version = 11 : i64} {
  func.func @_linear_kernel(%arg0: i32, %arg1: i32, %arg2: memref<32x32xbf16, #tpu.memory_space<vmem>>, %arg3: memref<32x32xbf16, #tpu.memory_space<vmem>>, %arg4: memref<1x32xf32, #tpu.memory_space<vmem>>, %arg5: memref<32x32xf32, #tpu.memory_space<vmem>>) attributes {dimension_semantics = [#tpu.dimension_semantics<parallel>, #tpu.dimension_semantics<parallel>], iteration_bounds = array<i64: 1, 1>, scalar_prefetch = 0 : i64, scratch_operands = 0 : i64, tpu.core_type = #tpu.core_type<tc>, window_params = [{transform_indices = @transform_0, window_bounds = array<i64: 32, 32>}, {transform_indices = @transform_1, window_bounds = array<i64: 32, 32>}, {transform_indices = @transform_2, window_bounds = array<i64: 1, 32>}, {transform_indices = @transform_3, window_bounds = array<i64: 32, 32>}]} {
    %c0 = arith.constant 0 : index
    %c0_0 = arith.constant 0 : index
    %0 = vector.load %arg2[%c0, %c0_0] : memref<32x32xbf16, #tpu.memory_space<vmem>>, vector<32x32xbf16>
    %c0_1 = arith.constant 0 : index
    %c0_2 = arith.constant 0 : index
    %1 = vector.load %arg3[%c0_1, %c0_2] : memref<32x32xbf16, #tpu.memory_space<vmem>>, vector<32x32xbf16>
    %cst = arith.constant dense<0.000000e+00> : vector<32x32xf32>
    %2 = tpu.matmul %0, %1, %cst {dimension_numbers = #tpu.dot_dimension_numbers<[1], [0], [0], [1], [0, 0, 1, 1], [], []>} : vector<32x32xbf16>, vector<32x32xbf16>, vector<32x32xf32> -> vector<32x32xf32>
    %c0_3 = arith.constant 0 : index
    %c0_4 = arith.constant 0 : index
    %3 = vector.load %arg4[%c0_3, %c0_4] : memref<1x32xf32, #tpu.memory_space<vmem>>, vector<1x32xf32>
    %4 = vector.broadcast %3 : vector<1x32xf32> to vector<32x32xf32>
    %5 = arith.addf %2, %4 : vector<32x32xf32>
    %c0_5 = arith.constant 0 : index
    %c0_6 = arith.constant 0 : index
    %6 = vector.load %arg5[%c0_5, %c0_6] : memref<32x32xf32, #tpu.memory_space<vmem>>, vector<32x32xf32>
    tpu.vector_store %arg5[%c0_5, %c0_6], %5 {strides = array<i32>} : memref<32x32xf32, #tpu.memory_space<vmem>>, vector<32x32xf32>,
    return
  }
  func.func @transform_0(%arg0: i32, %arg1: i32) -> (i32, i32) {
    %c0_i32 = arith.constant 0 : i32
    %c0_i32_0 = arith.constant 0 : i32
    return %arg0, %c0_i32 : i32, i32
  }
  func.func @transform_1(%arg0: i32, %arg1: i32) -> (i32, i32) {
    %c0_i32 = arith.constant 0 : i32
    %c0_i32_0 = arith.constant 0 : i32
    return %c0_i32, %arg1 : i32, i32
  }
  func.func @transform_2(%arg0: i32, %arg1: i32) -> (i32, i32) {
    %c0_i32 = arith.constant 0 : i32
    %c0_i32_0 = arith.constant 0 : i32
    return %c0_i32, %arg1 : i32, i32
  }
  func.func @transform_3(%arg0: i32, %arg1: i32) -> (i32, i32) {
    %c0_i32 = arith.constant 0 : i32
    return %arg0, %arg1 : i32, i32
  }
}

module attributes {stable_mosaic.version = 11 : i64} {
  func.func @_lstm_chunk_kernel(%arg0: i32, %arg1: i32, %arg2: memref<8x4x32xbf16, #tpu.memory_space<vmem>>, %arg3: memref<4x32xf32, #tpu.memory_space<vmem>>, %arg4: memref<4x32xf32, #tpu.memory_space<vmem>>, %arg5: memref<32x128xbf16, #tpu.memory_space<vmem>>, %arg6: memref<32x128xbf16, #tpu.memory_space<vmem>>, %arg7: memref<1x128xf32, #tpu.memory_space<vmem>>, %arg8: memref<8x4x32xbf16, #tpu.memory_space<vmem>>, %arg9: memref<4x32xf32, #tpu.memory_space<vmem>>, %arg10: memref<4x32xf32, #tpu.memory_space<vmem>>, %arg11: memref<8x4x128xf32, #tpu.memory_space<vmem>>, %arg12: memref<4x32xf32, #tpu.memory_space<vmem>>, %arg13: memref<4x32xf32, #tpu.memory_space<vmem>>) attributes {dimension_semantics = [#tpu.dimension_semantics<parallel>, #tpu.dimension_semantics<arbitrary>], iteration_bounds = array<i64: 1, 1>, scalar_prefetch = 0 : i64, scratch_operands = 3 : i64, tpu.core_type = #tpu.core_type<tc>, window_params = [{transform_indices = @transform_0, window_bounds = array<i64: 8, 4, 32>}, {transform_indices = @transform_1, window_bounds = array<i64: 4, 32>}, {transform_indices = @transform_2, window_bounds = array<i64: 4, 32>}, {pipeline_mode = #tpu.pipeline_mode<synchronous>, transform_indices = @transform_3, window_bounds = array<i64: 32, 128>}, {pipeline_mode = #tpu.pipeline_mode<synchronous>, transform_indices = @transform_4, window_bounds = array<i64: 32, 128>}, {pipeline_mode = #tpu.pipeline_mode<synchronous>, transform_indices = @transform_5, window_bounds = array<i64: 1, 128>}, {transform_indices = @transform_6, window_bounds = array<i64: 8, 4, 32>}, {transform_indices = @transform_7, window_bounds = array<i64: 4, 32>}, {transform_indices = @transform_8, window_bounds = array<i64: 4, 32>}]} {
    %c0_i32 = arith.constant 0 : i32
    %0 = arith.cmpi eq, %arg1, %c0_i32 : i32
    %1 = arith.extui %0 : i1 to i32
    %c0_i32_0 = arith.constant 0 : i32
    %2 = arith.cmpi ne, %1, %c0_i32_0 : i32
    scf.if %2 {
      %c0_141 = arith.constant 0 : index
      %c0_142 = arith.constant 0 : index
      %271 = vector.load %arg3[%c0_141, %c0_142] : memref<4x32xf32, #tpu.memory_space<vmem>>, vector<4x32xf32>
      %c0_143 = arith.constant 0 : index
      %c0_144 = arith.constant 0 : index
      %272 = vector.load %arg12[%c0_143, %c0_144] : memref<4x32xf32, #tpu.memory_space<vmem>>, vector<4x32xf32>
      tpu.vector_store %arg12[%c0_143, %c0_144], %271 {strides = array<i32>} : memref<4x32xf32, #tpu.memory_space<vmem>>, vector<4x32xf32>,
      %c0_145 = arith.constant 0 : index
      %c0_146 = arith.constant 0 : index
      %273 = vector.load %arg4[%c0_145, %c0_146] : memref<4x32xf32, #tpu.memory_space<vmem>>, vector<4x32xf32>
      %c0_147 = arith.constant 0 : index
      %c0_148 = arith.constant 0 : index
      %274 = vector.load %arg13[%c0_147, %c0_148] : memref<4x32xf32, #tpu.memory_space<vmem>>, vector<4x32xf32>
      tpu.vector_store %arg13[%c0_147, %c0_148], %273 {strides = array<i32>} : memref<4x32xf32, #tpu.memory_space<vmem>>, vector<4x32xf32>,
    } else {
    }
    %c0 = arith.constant 0 : index
    %c0_1 = arith.constant 0 : index
    %c0_2 = arith.constant 0 : index
    %3 = vector.load %arg2[%c0, %c0_1, %c0_2] : memref<8x4x32xbf16, #tpu.memory_space<vmem>>, vector<8x4x32xbf16>
    %4 = vector.shape_cast %3 : vector<8x4x32xbf16> to vector<32x32xbf16>
    %c0_3 = arith.constant 0 : index
    %c0_4 = arith.constant 0 : index
    %5 = vector.load %arg5[%c0_3, %c0_4] : memref<32x128xbf16, #tpu.memory_space<vmem>>, vector<32x128xbf16>
    %cst = arith.constant dense<0.000000e+00> : vector<32x128xf32>
    %6 = tpu.matmul %4, %5, %cst {dimension_numbers = #tpu.dot_dimension_numbers<[1], [0], [0], [1], [0, 0, 1, 1], [], []>} : vector<32x32xbf16>, vector<32x128xbf16>, vector<32x128xf32> -> vector<32x128xf32>
    %c0_5 = arith.constant 0 : index
    %c0_6 = arith.constant 0 : index
    %7 = vector.load %arg7[%c0_5, %c0_6] : memref<1x128xf32, #tpu.memory_space<vmem>>, vector<1x128xf32>
    %8 = vector.broadcast %7 : vector<1x128xf32> to vector<32x128xf32>
    %9 = arith.addf %6, %8 : vector<32x128xf32>
    %10 = vector.shape_cast %9 : vector<32x128xf32> to vector<8x4x128xf32>
    %c0_7 = arith.constant 0 : index
    %c0_8 = arith.constant 0 : index
    %c0_9 = arith.constant 0 : index
    %11 = vector.load %arg11[%c0_7, %c0_8, %c0_9] : memref<8x4x128xf32, #tpu.memory_space<vmem>>, vector<8x4x128xf32>
    tpu.vector_store %arg11[%c0_7, %c0_8, %c0_9], %10 {strides = array<i32>} : memref<8x4x128xf32, #tpu.memory_space<vmem>>, vector<8x4x128xf32>,
    %c0_i32_10 = arith.constant 0 : i32
    %c0_11 = arith.constant 0 : index
    %c0_12 = arith.constant 0 : index
    %12 = vector.load %arg12[%c0_11, %c0_12] : memref<4x32xf32, #tpu.memory_space<vmem>>, vector<4x32xf32>
    %c0_13 = arith.constant 0 : index
    %c0_14 = arith.constant 0 : index
    %13 = vector.load %arg13[%c0_13, %c0_14] : memref<4x32xf32, #tpu.memory_space<vmem>>, vector<4x32xf32>
    %14 = arith.index_cast %c0_i32_10 : i32 to index
    %c0_15 = arith.constant 0 : index
    %c0_16 = arith.constant 0 : index
    %15 = vector.load %arg11[%14, %c0_15, %c0_16] : memref<8x4x128xf32, #tpu.memory_space<vmem>>, vector<1x4x128xf32>
    %16 = vector.shape_cast %15 : vector<1x4x128xf32> to vector<4x128xf32>
    %17 = arith.truncf %12 : vector<4x32xf32> to vector<4x32xbf16>
    %c0_17 = arith.constant 0 : index
    %c0_18 = arith.constant 0 : index
    %18 = vector.load %arg6[%c0_17, %c0_18] : memref<32x128xbf16, #tpu.memory_space<vmem>>, vector<32x128xbf16>
    %cst_19 = arith.constant dense<0.000000e+00> : vector<4x128xf32>
    %19 = tpu.matmul %17, %18, %cst_19 {dimension_numbers = #tpu.dot_dimension_numbers<[1], [0], [0], [1], [0, 0, 1, 1], [], []>} : vector<4x32xbf16>, vector<32x128xbf16>, vector<4x128xf32> -> vector<4x128xf32>
    %20 = arith.addf %16, %19 : vector<4x128xf32>
    %21 = vector.extract_strided_slice %20 {offsets = [0, 0], sizes = [4, 96], strides = [1, 1]} : vector<4x128xf32> to vector<4x96xf32>
    %22 = arith.negf %21 : vector<4x96xf32>
    %23 = math.exp %22 : vector<4x96xf32>
    %cst_20 = arith.constant 1.000000e+00 : f32
    %24 = vector.broadcast %cst_20 : f32 to vector<4x96xf32>
    %25 = arith.addf %24, %23 : vector<4x96xf32>
    %26 = arith.divf %24, %25 : vector<4x96xf32>
    %27 = vector.extract_strided_slice %26 {offsets = [0, 0], sizes = [4, 32], strides = [1, 1]} : vector<4x96xf32> to vector<4x32xf32>
    %28 = vector.extract_strided_slice %26 {offsets = [0, 32], sizes = [4, 32], strides = [1, 1]} : vector<4x96xf32> to vector<4x32xf32>
    %29 = vector.extract_strided_slice %26 {offsets = [0, 64], sizes = [4, 32], strides = [1, 1]} : vector<4x96xf32> to vector<4x32xf32>
    %30 = vector.extract_strided_slice %20 {offsets = [0, 96], sizes = [4, 32], strides = [1, 1]} : vector<4x128xf32> to vector<4x32xf32>
    %31 = math.tanh %30 : vector<4x32xf32>
    %32 = arith.mulf %28, %13 : vector<4x32xf32>
    %33 = arith.mulf %27, %31 : vector<4x32xf32>
    %34 = arith.addf %32, %33 : vector<4x32xf32>
    %35 = math.tanh %34 : vector<4x32xf32>
    %36 = arith.mulf %29, %35 : vector<4x32xf32>
    %c0_21 = arith.constant 0 : index
    %c0_22 = arith.constant 0 : index
    %37 = vector.load %arg12[%c0_21, %c0_22] : memref<4x32xf32, #tpu.memory_space<vmem>>, vector<4x32xf32>
    tpu.vector_store %arg12[%c0_21, %c0_22], %36 {strides = array<i32>} : memref<4x32xf32, #tpu.memory_space<vmem>>, vector<4x32xf32>,
    %c0_23 = arith.constant 0 : index
    %c0_24 = arith.constant 0 : index
    %38 = vector.load %arg13[%c0_23, %c0_24] : memref<4x32xf32, #tpu.memory_space<vmem>>, vector<4x32xf32>
    tpu.vector_store %arg13[%c0_23, %c0_24], %34 {strides = array<i32>} : memref<4x32xf32, #tpu.memory_space<vmem>>, vector<4x32xf32>,
    %39 = arith.truncf %36 : vector<4x32xf32> to vector<4x32xbf16>
    %40 = arith.index_cast %c0_i32_10 : i32 to index
    %c0_25 = arith.constant 0 : index
    %c0_26 = arith.constant 0 : index
    %41 = vector.load %arg8[%40, %c0_25, %c0_26] : memref<8x4x32xbf16, #tpu.memory_space<vmem>>, vector<1x4x32xbf16>
    %42 = vector.shape_cast %41 : vector<1x4x32xbf16> to vector<4x32xbf16>
    %43 = vector.shape_cast %39 : vector<4x32xbf16> to vector<1x4x32xbf16>
    tpu.vector_store %arg8[%40, %c0_25, %c0_26], %43 {strides = array<i32>} : memref<8x4x32xbf16, #tpu.memory_space<vmem>>, vector<1x4x32xbf16>,
    %c1_i32 = arith.constant 1 : i32
    %c0_27 = arith.constant 0 : index
    %c0_28 = arith.constant 0 : index
    %44 = vector.load %arg12[%c0_27, %c0_28] : memref<4x32xf32, #tpu.memory_space<vmem>>, vector<4x32xf32>
    %c0_29 = arith.constant 0 : index
    %c0_30 = arith.constant 0 : index
    %45 = vector.load %arg13[%c0_29, %c0_30] : memref<4x32xf32, #tpu.memory_space<vmem>>, vector<4x32xf32>
    %46 = arith.index_cast %c1_i32 : i32 to index
    %c0_31 = arith.constant 0 : index
    %c0_32 = arith.constant 0 : index
    %47 = vector.load %arg11[%46, %c0_31, %c0_32] : memref<8x4x128xf32, #tpu.memory_space<vmem>>, vector<1x4x128xf32>
    %48 = vector.shape_cast %47 : vector<1x4x128xf32> to vector<4x128xf32>
    %49 = arith.truncf %44 : vector<4x32xf32> to vector<4x32xbf16>
    %c0_33 = arith.constant 0 : index
    %c0_34 = arith.constant 0 : index
    %50 = vector.load %arg6[%c0_33, %c0_34] : memref<32x128xbf16, #tpu.memory_space<vmem>>, vector<32x128xbf16>
    %cst_35 = arith.constant dense<0.000000e+00> : vector<4x128xf32>
    %51 = tpu.matmul %49, %50, %cst_35 {dimension_numbers = #tpu.dot_dimension_numbers<[1], [0], [0], [1], [0, 0, 1, 1], [], []>} : vector<4x32xbf16>, vector<32x128xbf16>, vector<4x128xf32> -> vector<4x128xf32>
    %52 = arith.addf %48, %51 : vector<4x128xf32>
    %53 = vector.extract_strided_slice %52 {offsets = [0, 0], sizes = [4, 96], strides = [1, 1]} : vector<4x128xf32> to vector<4x96xf32>
    %54 = arith.negf %53 : vector<4x96xf32>
    %55 = math.exp %54 : vector<4x96xf32>
    %cst_36 = arith.constant 1.000000e+00 : f32
    %56 = vector.broadcast %cst_36 : f32 to vector<4x96xf32>
    %57 = arith.addf %56, %55 : vector<4x96xf32>
    %58 = arith.divf %56, %57 : vector<4x96xf32>
    %59 = vector.extract_strided_slice %58 {offsets = [0, 0], sizes = [4, 32], strides = [1, 1]} : vector<4x96xf32> to vector<4x32xf32>
    %60 = vector.extract_strided_slice %58 {offsets = [0, 32], sizes = [4, 32], strides = [1, 1]} : vector<4x96xf32> to vector<4x32xf32>
    %61 = vector.extract_strided_slice %58 {offsets = [0, 64], sizes = [4, 32], strides = [1, 1]} : vector<4x96xf32> to vector<4x32xf32>
    %62 = vector.extract_strided_slice %52 {offsets = [0, 96], sizes = [4, 32], strides = [1, 1]} : vector<4x128xf32> to vector<4x32xf32>
    %63 = math.tanh %62 : vector<4x32xf32>
    %64 = arith.mulf %60, %45 : vector<4x32xf32>
    %65 = arith.mulf %59, %63 : vector<4x32xf32>
    %66 = arith.addf %64, %65 : vector<4x32xf32>
    %67 = math.tanh %66 : vector<4x32xf32>
    %68 = arith.mulf %61, %67 : vector<4x32xf32>
    %c0_37 = arith.constant 0 : index
    %c0_38 = arith.constant 0 : index
    %69 = vector.load %arg12[%c0_37, %c0_38] : memref<4x32xf32, #tpu.memory_space<vmem>>, vector<4x32xf32>
    tpu.vector_store %arg12[%c0_37, %c0_38], %68 {strides = array<i32>} : memref<4x32xf32, #tpu.memory_space<vmem>>, vector<4x32xf32>,
    %c0_39 = arith.constant 0 : index
    %c0_40 = arith.constant 0 : index
    %70 = vector.load %arg13[%c0_39, %c0_40] : memref<4x32xf32, #tpu.memory_space<vmem>>, vector<4x32xf32>
    tpu.vector_store %arg13[%c0_39, %c0_40], %66 {strides = array<i32>} : memref<4x32xf32, #tpu.memory_space<vmem>>, vector<4x32xf32>,
    %71 = arith.truncf %68 : vector<4x32xf32> to vector<4x32xbf16>
    %72 = arith.index_cast %c1_i32 : i32 to index
    %c0_41 = arith.constant 0 : index
    %c0_42 = arith.constant 0 : index
    %73 = vector.load %arg8[%72, %c0_41, %c0_42] : memref<8x4x32xbf16, #tpu.memory_space<vmem>>, vector<1x4x32xbf16>
    %74 = vector.shape_cast %73 : vector<1x4x32xbf16> to vector<4x32xbf16>
    %75 = vector.shape_cast %71 : vector<4x32xbf16> to vector<1x4x32xbf16>
    tpu.vector_store %arg8[%72, %c0_41, %c0_42], %75 {strides = array<i32>} : memref<8x4x32xbf16, #tpu.memory_space<vmem>>, vector<1x4x32xbf16>,
    %c2_i32 = arith.constant 2 : i32
    %c0_43 = arith.constant 0 : index
    %c0_44 = arith.constant 0 : index
    %76 = vector.load %arg12[%c0_43, %c0_44] : memref<4x32xf32, #tpu.memory_space<vmem>>, vector<4x32xf32>
    %c0_45 = arith.constant 0 : index
    %c0_46 = arith.constant 0 : index
    %77 = vector.load %arg13[%c0_45, %c0_46] : memref<4x32xf32, #tpu.memory_space<vmem>>, vector<4x32xf32>
    %78 = arith.index_cast %c2_i32 : i32 to index
    %c0_47 = arith.constant 0 : index
    %c0_48 = arith.constant 0 : index
    %79 = vector.load %arg11[%78, %c0_47, %c0_48] : memref<8x4x128xf32, #tpu.memory_space<vmem>>, vector<1x4x128xf32>
    %80 = vector.shape_cast %79 : vector<1x4x128xf32> to vector<4x128xf32>
    %81 = arith.truncf %76 : vector<4x32xf32> to vector<4x32xbf16>
    %c0_49 = arith.constant 0 : index
    %c0_50 = arith.constant 0 : index
    %82 = vector.load %arg6[%c0_49, %c0_50] : memref<32x128xbf16, #tpu.memory_space<vmem>>, vector<32x128xbf16>
    %cst_51 = arith.constant dense<0.000000e+00> : vector<4x128xf32>
    %83 = tpu.matmul %81, %82, %cst_51 {dimension_numbers = #tpu.dot_dimension_numbers<[1], [0], [0], [1], [0, 0, 1, 1], [], []>} : vector<4x32xbf16>, vector<32x128xbf16>, vector<4x128xf32> -> vector<4x128xf32>
    %84 = arith.addf %80, %83 : vector<4x128xf32>
    %85 = vector.extract_strided_slice %84 {offsets = [0, 0], sizes = [4, 96], strides = [1, 1]} : vector<4x128xf32> to vector<4x96xf32>
    %86 = arith.negf %85 : vector<4x96xf32>
    %87 = math.exp %86 : vector<4x96xf32>
    %cst_52 = arith.constant 1.000000e+00 : f32
    %88 = vector.broadcast %cst_52 : f32 to vector<4x96xf32>
    %89 = arith.addf %88, %87 : vector<4x96xf32>
    %90 = arith.divf %88, %89 : vector<4x96xf32>
    %91 = vector.extract_strided_slice %90 {offsets = [0, 0], sizes = [4, 32], strides = [1, 1]} : vector<4x96xf32> to vector<4x32xf32>
    %92 = vector.extract_strided_slice %90 {offsets = [0, 32], sizes = [4, 32], strides = [1, 1]} : vector<4x96xf32> to vector<4x32xf32>
    %93 = vector.extract_strided_slice %90 {offsets = [0, 64], sizes = [4, 32], strides = [1, 1]} : vector<4x96xf32> to vector<4x32xf32>
    %94 = vector.extract_strided_slice %84 {offsets = [0, 96], sizes = [4, 32], strides = [1, 1]} : vector<4x128xf32> to vector<4x32xf32>
    %95 = math.tanh %94 : vector<4x32xf32>
    %96 = arith.mulf %92, %77 : vector<4x32xf32>
    %97 = arith.mulf %91, %95 : vector<4x32xf32>
    %98 = arith.addf %96, %97 : vector<4x32xf32>
    %99 = math.tanh %98 : vector<4x32xf32>
    %100 = arith.mulf %93, %99 : vector<4x32xf32>
    %c0_53 = arith.constant 0 : index
    %c0_54 = arith.constant 0 : index
    %101 = vector.load %arg12[%c0_53, %c0_54] : memref<4x32xf32, #tpu.memory_space<vmem>>, vector<4x32xf32>
    tpu.vector_store %arg12[%c0_53, %c0_54], %100 {strides = array<i32>} : memref<4x32xf32, #tpu.memory_space<vmem>>, vector<4x32xf32>,
    %c0_55 = arith.constant 0 : index
    %c0_56 = arith.constant 0 : index
    %102 = vector.load %arg13[%c0_55, %c0_56] : memref<4x32xf32, #tpu.memory_space<vmem>>, vector<4x32xf32>
    tpu.vector_store %arg13[%c0_55, %c0_56], %98 {strides = array<i32>} : memref<4x32xf32, #tpu.memory_space<vmem>>, vector<4x32xf32>,
    %103 = arith.truncf %100 : vector<4x32xf32> to vector<4x32xbf16>
    %104 = arith.index_cast %c2_i32 : i32 to index
    %c0_57 = arith.constant 0 : index
    %c0_58 = arith.constant 0 : index
    %105 = vector.load %arg8[%104, %c0_57, %c0_58] : memref<8x4x32xbf16, #tpu.memory_space<vmem>>, vector<1x4x32xbf16>
    %106 = vector.shape_cast %105 : vector<1x4x32xbf16> to vector<4x32xbf16>
    %107 = vector.shape_cast %103 : vector<4x32xbf16> to vector<1x4x32xbf16>
    tpu.vector_store %arg8[%104, %c0_57, %c0_58], %107 {strides = array<i32>} : memref<8x4x32xbf16, #tpu.memory_space<vmem>>, vector<1x4x32xbf16>,
    %c3_i32 = arith.constant 3 : i32
    %c0_59 = arith.constant 0 : index
    %c0_60 = arith.constant 0 : index
    %108 = vector.load %arg12[%c0_59, %c0_60] : memref<4x32xf32, #tpu.memory_space<vmem>>, vector<4x32xf32>
    %c0_61 = arith.constant 0 : index
    %c0_62 = arith.constant 0 : index
    %109 = vector.load %arg13[%c0_61, %c0_62] : memref<4x32xf32, #tpu.memory_space<vmem>>, vector<4x32xf32>
    %110 = arith.index_cast %c3_i32 : i32 to index
    %c0_63 = arith.constant 0 : index
    %c0_64 = arith.constant 0 : index
    %111 = vector.load %arg11[%110, %c0_63, %c0_64] : memref<8x4x128xf32, #tpu.memory_space<vmem>>, vector<1x4x128xf32>
    %112 = vector.shape_cast %111 : vector<1x4x128xf32> to vector<4x128xf32>
    %113 = arith.truncf %108 : vector<4x32xf32> to vector<4x32xbf16>
    %c0_65 = arith.constant 0 : index
    %c0_66 = arith.constant 0 : index
    %114 = vector.load %arg6[%c0_65, %c0_66] : memref<32x128xbf16, #tpu.memory_space<vmem>>, vector<32x128xbf16>
    %cst_67 = arith.constant dense<0.000000e+00> : vector<4x128xf32>
    %115 = tpu.matmul %113, %114, %cst_67 {dimension_numbers = #tpu.dot_dimension_numbers<[1], [0], [0], [1], [0, 0, 1, 1], [], []>} : vector<4x32xbf16>, vector<32x128xbf16>, vector<4x128xf32> -> vector<4x128xf32>
    %116 = arith.addf %112, %115 : vector<4x128xf32>
    %117 = vector.extract_strided_slice %116 {offsets = [0, 0], sizes = [4, 96], strides = [1, 1]} : vector<4x128xf32> to vector<4x96xf32>
    %118 = arith.negf %117 : vector<4x96xf32>
    %119 = math.exp %118 : vector<4x96xf32>
    %cst_68 = arith.constant 1.000000e+00 : f32
    %120 = vector.broadcast %cst_68 : f32 to vector<4x96xf32>
    %121 = arith.addf %120, %119 : vector<4x96xf32>
    %122 = arith.divf %120, %121 : vector<4x96xf32>
    %123 = vector.extract_strided_slice %122 {offsets = [0, 0], sizes = [4, 32], strides = [1, 1]} : vector<4x96xf32> to vector<4x32xf32>
    %124 = vector.extract_strided_slice %122 {offsets = [0, 32], sizes = [4, 32], strides = [1, 1]} : vector<4x96xf32> to vector<4x32xf32>
    %125 = vector.extract_strided_slice %122 {offsets = [0, 64], sizes = [4, 32], strides = [1, 1]} : vector<4x96xf32> to vector<4x32xf32>
    %126 = vector.extract_strided_slice %116 {offsets = [0, 96], sizes = [4, 32], strides = [1, 1]} : vector<4x128xf32> to vector<4x32xf32>
    %127 = math.tanh %126 : vector<4x32xf32>
    %128 = arith.mulf %124, %109 : vector<4x32xf32>
    %129 = arith.mulf %123, %127 : vector<4x32xf32>
    %130 = arith.addf %128, %129 : vector<4x32xf32>
    %131 = math.tanh %130 : vector<4x32xf32>
    %132 = arith.mulf %125, %131 : vector<4x32xf32>
    %c0_69 = arith.constant 0 : index
    %c0_70 = arith.constant 0 : index
    %133 = vector.load %arg12[%c0_69, %c0_70] : memref<4x32xf32, #tpu.memory_space<vmem>>, vector<4x32xf32>
    tpu.vector_store %arg12[%c0_69, %c0_70], %132 {strides = array<i32>} : memref<4x32xf32, #tpu.memory_space<vmem>>, vector<4x32xf32>,
    %c0_71 = arith.constant 0 : index
    %c0_72 = arith.constant 0 : index
    %134 = vector.load %arg13[%c0_71, %c0_72] : memref<4x32xf32, #tpu.memory_space<vmem>>, vector<4x32xf32>
    tpu.vector_store %arg13[%c0_71, %c0_72], %130 {strides = array<i32>} : memref<4x32xf32, #tpu.memory_space<vmem>>, vector<4x32xf32>,
    %135 = arith.truncf %132 : vector<4x32xf32> to vector<4x32xbf16>
    %136 = arith.index_cast %c3_i32 : i32 to index
    %c0_73 = arith.constant 0 : index
    %c0_74 = arith.constant 0 : index
    %137 = vector.load %arg8[%136, %c0_73, %c0_74] : memref<8x4x32xbf16, #tpu.memory_space<vmem>>, vector<1x4x32xbf16>
    %138 = vector.shape_cast %137 : vector<1x4x32xbf16> to vector<4x32xbf16>
    %139 = vector.shape_cast %135 : vector<4x32xbf16> to vector<1x4x32xbf16>
    tpu.vector_store %arg8[%136, %c0_73, %c0_74], %139 {strides = array<i32>} : memref<8x4x32xbf16, #tpu.memory_space<vmem>>, vector<1x4x32xbf16>,
    %c4_i32 = arith.constant 4 : i32
    %c0_75 = arith.constant 0 : index
    %c0_76 = arith.constant 0 : index
    %140 = vector.load %arg12[%c0_75, %c0_76] : memref<4x32xf32, #tpu.memory_space<vmem>>, vector<4x32xf32>
    %c0_77 = arith.constant 0 : index
    %c0_78 = arith.constant 0 : index
    %141 = vector.load %arg13[%c0_77, %c0_78] : memref<4x32xf32, #tpu.memory_space<vmem>>, vector<4x32xf32>
    %142 = arith.index_cast %c4_i32 : i32 to index
    %c0_79 = arith.constant 0 : index
    %c0_80 = arith.constant 0 : index
    %143 = vector.load %arg11[%142, %c0_79, %c0_80] : memref<8x4x128xf32, #tpu.memory_space<vmem>>, vector<1x4x128xf32>
    %144 = vector.shape_cast %143 : vector<1x4x128xf32> to vector<4x128xf32>
    %145 = arith.truncf %140 : vector<4x32xf32> to vector<4x32xbf16>
    %c0_81 = arith.constant 0 : index
    %c0_82 = arith.constant 0 : index
    %146 = vector.load %arg6[%c0_81, %c0_82] : memref<32x128xbf16, #tpu.memory_space<vmem>>, vector<32x128xbf16>
    %cst_83 = arith.constant dense<0.000000e+00> : vector<4x128xf32>
    %147 = tpu.matmul %145, %146, %cst_83 {dimension_numbers = #tpu.dot_dimension_numbers<[1], [0], [0], [1], [0, 0, 1, 1], [], []>} : vector<4x32xbf16>, vector<32x128xbf16>, vector<4x128xf32> -> vector<4x128xf32>
    %148 = arith.addf %144, %147 : vector<4x128xf32>
    %149 = vector.extract_strided_slice %148 {offsets = [0, 0], sizes = [4, 96], strides = [1, 1]} : vector<4x128xf32> to vector<4x96xf32>
    %150 = arith.negf %149 : vector<4x96xf32>
    %151 = math.exp %150 : vector<4x96xf32>
    %cst_84 = arith.constant 1.000000e+00 : f32
    %152 = vector.broadcast %cst_84 : f32 to vector<4x96xf32>
    %153 = arith.addf %152, %151 : vector<4x96xf32>
    %154 = arith.divf %152, %153 : vector<4x96xf32>
    %155 = vector.extract_strided_slice %154 {offsets = [0, 0], sizes = [4, 32], strides = [1, 1]} : vector<4x96xf32> to vector<4x32xf32>
    %156 = vector.extract_strided_slice %154 {offsets = [0, 32], sizes = [4, 32], strides = [1, 1]} : vector<4x96xf32> to vector<4x32xf32>
    %157 = vector.extract_strided_slice %154 {offsets = [0, 64], sizes = [4, 32], strides = [1, 1]} : vector<4x96xf32> to vector<4x32xf32>
    %158 = vector.extract_strided_slice %148 {offsets = [0, 96], sizes = [4, 32], strides = [1, 1]} : vector<4x128xf32> to vector<4x32xf32>
    %159 = math.tanh %158 : vector<4x32xf32>
    %160 = arith.mulf %156, %141 : vector<4x32xf32>
    %161 = arith.mulf %155, %159 : vector<4x32xf32>
    %162 = arith.addf %160, %161 : vector<4x32xf32>
    %163 = math.tanh %162 : vector<4x32xf32>
    %164 = arith.mulf %157, %163 : vector<4x32xf32>
    %c0_85 = arith.constant 0 : index
    %c0_86 = arith.constant 0 : index
    %165 = vector.load %arg12[%c0_85, %c0_86] : memref<4x32xf32, #tpu.memory_space<vmem>>, vector<4x32xf32>
    tpu.vector_store %arg12[%c0_85, %c0_86], %164 {strides = array<i32>} : memref<4x32xf32, #tpu.memory_space<vmem>>, vector<4x32xf32>,
    %c0_87 = arith.constant 0 : index
    %c0_88 = arith.constant 0 : index
    %166 = vector.load %arg13[%c0_87, %c0_88] : memref<4x32xf32, #tpu.memory_space<vmem>>, vector<4x32xf32>
    tpu.vector_store %arg13[%c0_87, %c0_88], %162 {strides = array<i32>} : memref<4x32xf32, #tpu.memory_space<vmem>>, vector<4x32xf32>,
    %167 = arith.truncf %164 : vector<4x32xf32> to vector<4x32xbf16>
    %168 = arith.index_cast %c4_i32 : i32 to index
    %c0_89 = arith.constant 0 : index
    %c0_90 = arith.constant 0 : index
    %169 = vector.load %arg8[%168, %c0_89, %c0_90] : memref<8x4x32xbf16, #tpu.memory_space<vmem>>, vector<1x4x32xbf16>
    %170 = vector.shape_cast %169 : vector<1x4x32xbf16> to vector<4x32xbf16>
    %171 = vector.shape_cast %167 : vector<4x32xbf16> to vector<1x4x32xbf16>
    tpu.vector_store %arg8[%168, %c0_89, %c0_90], %171 {strides = array<i32>} : memref<8x4x32xbf16, #tpu.memory_space<vmem>>, vector<1x4x32xbf16>,
    %c5_i32 = arith.constant 5 : i32
    %c0_91 = arith.constant 0 : index
    %c0_92 = arith.constant 0 : index
    %172 = vector.load %arg12[%c0_91, %c0_92] : memref<4x32xf32, #tpu.memory_space<vmem>>, vector<4x32xf32>
    %c0_93 = arith.constant 0 : index
    %c0_94 = arith.constant 0 : index
    %173 = vector.load %arg13[%c0_93, %c0_94] : memref<4x32xf32, #tpu.memory_space<vmem>>, vector<4x32xf32>
    %174 = arith.index_cast %c5_i32 : i32 to index
    %c0_95 = arith.constant 0 : index
    %c0_96 = arith.constant 0 : index
    %175 = vector.load %arg11[%174, %c0_95, %c0_96] : memref<8x4x128xf32, #tpu.memory_space<vmem>>, vector<1x4x128xf32>
    %176 = vector.shape_cast %175 : vector<1x4x128xf32> to vector<4x128xf32>
    %177 = arith.truncf %172 : vector<4x32xf32> to vector<4x32xbf16>
    %c0_97 = arith.constant 0 : index
    %c0_98 = arith.constant 0 : index
    %178 = vector.load %arg6[%c0_97, %c0_98] : memref<32x128xbf16, #tpu.memory_space<vmem>>, vector<32x128xbf16>
    %cst_99 = arith.constant dense<0.000000e+00> : vector<4x128xf32>
    %179 = tpu.matmul %177, %178, %cst_99 {dimension_numbers = #tpu.dot_dimension_numbers<[1], [0], [0], [1], [0, 0, 1, 1], [], []>} : vector<4x32xbf16>, vector<32x128xbf16>, vector<4x128xf32> -> vector<4x128xf32>
    %180 = arith.addf %176, %179 : vector<4x128xf32>
    %181 = vector.extract_strided_slice %180 {offsets = [0, 0], sizes = [4, 96], strides = [1, 1]} : vector<4x128xf32> to vector<4x96xf32>
    %182 = arith.negf %181 : vector<4x96xf32>
    %183 = math.exp %182 : vector<4x96xf32>
    %cst_100 = arith.constant 1.000000e+00 : f32
    %184 = vector.broadcast %cst_100 : f32 to vector<4x96xf32>
    %185 = arith.addf %184, %183 : vector<4x96xf32>
    %186 = arith.divf %184, %185 : vector<4x96xf32>
    %187 = vector.extract_strided_slice %186 {offsets = [0, 0], sizes = [4, 32], strides = [1, 1]} : vector<4x96xf32> to vector<4x32xf32>
    %188 = vector.extract_strided_slice %186 {offsets = [0, 32], sizes = [4, 32], strides = [1, 1]} : vector<4x96xf32> to vector<4x32xf32>
    %189 = vector.extract_strided_slice %186 {offsets = [0, 64], sizes = [4, 32], strides = [1, 1]} : vector<4x96xf32> to vector<4x32xf32>
    %190 = vector.extract_strided_slice %180 {offsets = [0, 96], sizes = [4, 32], strides = [1, 1]} : vector<4x128xf32> to vector<4x32xf32>
    %191 = math.tanh %190 : vector<4x32xf32>
    %192 = arith.mulf %188, %173 : vector<4x32xf32>
    %193 = arith.mulf %187, %191 : vector<4x32xf32>
    %194 = arith.addf %192, %193 : vector<4x32xf32>
    %195 = math.tanh %194 : vector<4x32xf32>
    %196 = arith.mulf %189, %195 : vector<4x32xf32>
    %c0_101 = arith.constant 0 : index
    %c0_102 = arith.constant 0 : index
    %197 = vector.load %arg12[%c0_101, %c0_102] : memref<4x32xf32, #tpu.memory_space<vmem>>, vector<4x32xf32>
    tpu.vector_store %arg12[%c0_101, %c0_102], %196 {strides = array<i32>} : memref<4x32xf32, #tpu.memory_space<vmem>>, vector<4x32xf32>,
    %c0_103 = arith.constant 0 : index
    %c0_104 = arith.constant 0 : index
    %198 = vector.load %arg13[%c0_103, %c0_104] : memref<4x32xf32, #tpu.memory_space<vmem>>, vector<4x32xf32>
    tpu.vector_store %arg13[%c0_103, %c0_104], %194 {strides = array<i32>} : memref<4x32xf32, #tpu.memory_space<vmem>>, vector<4x32xf32>,
    %199 = arith.truncf %196 : vector<4x32xf32> to vector<4x32xbf16>
    %200 = arith.index_cast %c5_i32 : i32 to index
    %c0_105 = arith.constant 0 : index
    %c0_106 = arith.constant 0 : index
    %201 = vector.load %arg8[%200, %c0_105, %c0_106] : memref<8x4x32xbf16, #tpu.memory_space<vmem>>, vector<1x4x32xbf16>
    %202 = vector.shape_cast %201 : vector<1x4x32xbf16> to vector<4x32xbf16>
    %203 = vector.shape_cast %199 : vector<4x32xbf16> to vector<1x4x32xbf16>
    tpu.vector_store %arg8[%200, %c0_105, %c0_106], %203 {strides = array<i32>} : memref<8x4x32xbf16, #tpu.memory_space<vmem>>, vector<1x4x32xbf16>,
    %c6_i32 = arith.constant 6 : i32
    %c0_107 = arith.constant 0 : index
    %c0_108 = arith.constant 0 : index
    %204 = vector.load %arg12[%c0_107, %c0_108] : memref<4x32xf32, #tpu.memory_space<vmem>>, vector<4x32xf32>
    %c0_109 = arith.constant 0 : index
    %c0_110 = arith.constant 0 : index
    %205 = vector.load %arg13[%c0_109, %c0_110] : memref<4x32xf32, #tpu.memory_space<vmem>>, vector<4x32xf32>
    %206 = arith.index_cast %c6_i32 : i32 to index
    %c0_111 = arith.constant 0 : index
    %c0_112 = arith.constant 0 : index
    %207 = vector.load %arg11[%206, %c0_111, %c0_112] : memref<8x4x128xf32, #tpu.memory_space<vmem>>, vector<1x4x128xf32>
    %208 = vector.shape_cast %207 : vector<1x4x128xf32> to vector<4x128xf32>
    %209 = arith.truncf %204 : vector<4x32xf32> to vector<4x32xbf16>
    %c0_113 = arith.constant 0 : index
    %c0_114 = arith.constant 0 : index
    %210 = vector.load %arg6[%c0_113, %c0_114] : memref<32x128xbf16, #tpu.memory_space<vmem>>, vector<32x128xbf16>
    %cst_115 = arith.constant dense<0.000000e+00> : vector<4x128xf32>
    %211 = tpu.matmul %209, %210, %cst_115 {dimension_numbers = #tpu.dot_dimension_numbers<[1], [0], [0], [1], [0, 0, 1, 1], [], []>} : vector<4x32xbf16>, vector<32x128xbf16>, vector<4x128xf32> -> vector<4x128xf32>
    %212 = arith.addf %208, %211 : vector<4x128xf32>
    %213 = vector.extract_strided_slice %212 {offsets = [0, 0], sizes = [4, 96], strides = [1, 1]} : vector<4x128xf32> to vector<4x96xf32>
    %214 = arith.negf %213 : vector<4x96xf32>
    %215 = math.exp %214 : vector<4x96xf32>
    %cst_116 = arith.constant 1.000000e+00 : f32
    %216 = vector.broadcast %cst_116 : f32 to vector<4x96xf32>
    %217 = arith.addf %216, %215 : vector<4x96xf32>
    %218 = arith.divf %216, %217 : vector<4x96xf32>
    %219 = vector.extract_strided_slice %218 {offsets = [0, 0], sizes = [4, 32], strides = [1, 1]} : vector<4x96xf32> to vector<4x32xf32>
    %220 = vector.extract_strided_slice %218 {offsets = [0, 32], sizes = [4, 32], strides = [1, 1]} : vector<4x96xf32> to vector<4x32xf32>
    %221 = vector.extract_strided_slice %218 {offsets = [0, 64], sizes = [4, 32], strides = [1, 1]} : vector<4x96xf32> to vector<4x32xf32>
    %222 = vector.extract_strided_slice %212 {offsets = [0, 96], sizes = [4, 32], strides = [1, 1]} : vector<4x128xf32> to vector<4x32xf32>
    %223 = math.tanh %222 : vector<4x32xf32>
    %224 = arith.mulf %220, %205 : vector<4x32xf32>
    %225 = arith.mulf %219, %223 : vector<4x32xf32>
    %226 = arith.addf %224, %225 : vector<4x32xf32>
    %227 = math.tanh %226 : vector<4x32xf32>
    %228 = arith.mulf %221, %227 : vector<4x32xf32>
    %c0_117 = arith.constant 0 : index
    %c0_118 = arith.constant 0 : index
    %229 = vector.load %arg12[%c0_117, %c0_118] : memref<4x32xf32, #tpu.memory_space<vmem>>, vector<4x32xf32>
    tpu.vector_store %arg12[%c0_117, %c0_118], %228 {strides = array<i32>} : memref<4x32xf32, #tpu.memory_space<vmem>>, vector<4x32xf32>,
    %c0_119 = arith.constant 0 : index
    %c0_120 = arith.constant 0 : index
    %230 = vector.load %arg13[%c0_119, %c0_120] : memref<4x32xf32, #tpu.memory_space<vmem>>, vector<4x32xf32>
    tpu.vector_store %arg13[%c0_119, %c0_120], %226 {strides = array<i32>} : memref<4x32xf32, #tpu.memory_space<vmem>>, vector<4x32xf32>,
    %231 = arith.truncf %228 : vector<4x32xf32> to vector<4x32xbf16>
    %232 = arith.index_cast %c6_i32 : i32 to index
    %c0_121 = arith.constant 0 : index
    %c0_122 = arith.constant 0 : index
    %233 = vector.load %arg8[%232, %c0_121, %c0_122] : memref<8x4x32xbf16, #tpu.memory_space<vmem>>, vector<1x4x32xbf16>
    %234 = vector.shape_cast %233 : vector<1x4x32xbf16> to vector<4x32xbf16>
    %235 = vector.shape_cast %231 : vector<4x32xbf16> to vector<1x4x32xbf16>
    tpu.vector_store %arg8[%232, %c0_121, %c0_122], %235 {strides = array<i32>} : memref<8x4x32xbf16, #tpu.memory_space<vmem>>, vector<1x4x32xbf16>,
    %c7_i32 = arith.constant 7 : i32
    %c0_123 = arith.constant 0 : index
    %c0_124 = arith.constant 0 : index
    %236 = vector.load %arg12[%c0_123, %c0_124] : memref<4x32xf32, #tpu.memory_space<vmem>>, vector<4x32xf32>
    %c0_125 = arith.constant 0 : index
    %c0_126 = arith.constant 0 : index
    %237 = vector.load %arg13[%c0_125, %c0_126] : memref<4x32xf32, #tpu.memory_space<vmem>>, vector<4x32xf32>
    %238 = arith.index_cast %c7_i32 : i32 to index
    %c0_127 = arith.constant 0 : index
    %c0_128 = arith.constant 0 : index
    %239 = vector.load %arg11[%238, %c0_127, %c0_128] : memref<8x4x128xf32, #tpu.memory_space<vmem>>, vector<1x4x128xf32>
    %240 = vector.shape_cast %239 : vector<1x4x128xf32> to vector<4x128xf32>
    %241 = arith.truncf %236 : vector<4x32xf32> to vector<4x32xbf16>
    %c0_129 = arith.constant 0 : index
    %c0_130 = arith.constant 0 : index
    %242 = vector.load %arg6[%c0_129, %c0_130] : memref<32x128xbf16, #tpu.memory_space<vmem>>, vector<32x128xbf16>
    %cst_131 = arith.constant dense<0.000000e+00> : vector<4x128xf32>
    %243 = tpu.matmul %241, %242, %cst_131 {dimension_numbers = #tpu.dot_dimension_numbers<[1], [0], [0], [1], [0, 0, 1, 1], [], []>} : vector<4x32xbf16>, vector<32x128xbf16>, vector<4x128xf32> -> vector<4x128xf32>
    %244 = arith.addf %240, %243 : vector<4x128xf32>
    %245 = vector.extract_strided_slice %244 {offsets = [0, 0], sizes = [4, 96], strides = [1, 1]} : vector<4x128xf32> to vector<4x96xf32>
    %246 = arith.negf %245 : vector<4x96xf32>
    %247 = math.exp %246 : vector<4x96xf32>
    %cst_132 = arith.constant 1.000000e+00 : f32
    %248 = vector.broadcast %cst_132 : f32 to vector<4x96xf32>
    %249 = arith.addf %248, %247 : vector<4x96xf32>
    %250 = arith.divf %248, %249 : vector<4x96xf32>
    %251 = vector.extract_strided_slice %250 {offsets = [0, 0], sizes = [4, 32], strides = [1, 1]} : vector<4x96xf32> to vector<4x32xf32>
    %252 = vector.extract_strided_slice %250 {offsets = [0, 32], sizes = [4, 32], strides = [1, 1]} : vector<4x96xf32> to vector<4x32xf32>
    %253 = vector.extract_strided_slice %250 {offsets = [0, 64], sizes = [4, 32], strides = [1, 1]} : vector<4x96xf32> to vector<4x32xf32>
    %254 = vector.extract_strided_slice %244 {offsets = [0, 96], sizes = [4, 32], strides = [1, 1]} : vector<4x128xf32> to vector<4x32xf32>
    %255 = math.tanh %254 : vector<4x32xf32>
    %256 = arith.mulf %252, %237 : vector<4x32xf32>
    %257 = arith.mulf %251, %255 : vector<4x32xf32>
    %258 = arith.addf %256, %257 : vector<4x32xf32>
    %259 = math.tanh %258 : vector<4x32xf32>
    %260 = arith.mulf %253, %259 : vector<4x32xf32>
    %c0_133 = arith.constant 0 : index
    %c0_134 = arith.constant 0 : index
    %261 = vector.load %arg12[%c0_133, %c0_134] : memref<4x32xf32, #tpu.memory_space<vmem>>, vector<4x32xf32>
    tpu.vector_store %arg12[%c0_133, %c0_134], %260 {strides = array<i32>} : memref<4x32xf32, #tpu.memory_space<vmem>>, vector<4x32xf32>,
    %c0_135 = arith.constant 0 : index
    %c0_136 = arith.constant 0 : index
    %262 = vector.load %arg13[%c0_135, %c0_136] : memref<4x32xf32, #tpu.memory_space<vmem>>, vector<4x32xf32>
    tpu.vector_store %arg13[%c0_135, %c0_136], %258 {strides = array<i32>} : memref<4x32xf32, #tpu.memory_space<vmem>>, vector<4x32xf32>,
    %263 = arith.truncf %260 : vector<4x32xf32> to vector<4x32xbf16>
    %264 = arith.index_cast %c7_i32 : i32 to index
    %c0_137 = arith.constant 0 : index
    %c0_138 = arith.constant 0 : index
    %265 = vector.load %arg8[%264, %c0_137, %c0_138] : memref<8x4x32xbf16, #tpu.memory_space<vmem>>, vector<1x4x32xbf16>
    %266 = vector.shape_cast %265 : vector<1x4x32xbf16> to vector<4x32xbf16>
    %267 = vector.shape_cast %263 : vector<4x32xbf16> to vector<1x4x32xbf16>
    tpu.vector_store %arg8[%264, %c0_137, %c0_138], %267 {strides = array<i32>} : memref<8x4x32xbf16, #tpu.memory_space<vmem>>, vector<1x4x32xbf16>,
    %c8_i32 = arith.constant 8 : i32
    %c0_i32_139 = arith.constant 0 : i32
    %268 = arith.cmpi eq, %arg1, %c0_i32_139 : i32
    %269 = arith.extui %268 : i1 to i32
    %c0_i32_140 = arith.constant 0 : i32
    %270 = arith.cmpi ne, %269, %c0_i32_140 : i32
    scf.if %270 {
      %c0_141 = arith.constant 0 : index
      %c0_142 = arith.constant 0 : index
      %271 = vector.load %arg12[%c0_141, %c0_142] : memref<4x32xf32, #tpu.memory_space<vmem>>, vector<4x32xf32>
      %c0_143 = arith.constant 0 : index
      %c0_144 = arith.constant 0 : index
      %272 = vector.load %arg9[%c0_143, %c0_144] : memref<4x32xf32, #tpu.memory_space<vmem>>, vector<4x32xf32>
      tpu.vector_store %arg9[%c0_143, %c0_144], %271 {strides = array<i32>} : memref<4x32xf32, #tpu.memory_space<vmem>>, vector<4x32xf32>,
      %c0_145 = arith.constant 0 : index
      %c0_146 = arith.constant 0 : index
      %273 = vector.load %arg13[%c0_145, %c0_146] : memref<4x32xf32, #tpu.memory_space<vmem>>, vector<4x32xf32>
      %c0_147 = arith.constant 0 : index
      %c0_148 = arith.constant 0 : index
      %274 = vector.load %arg10[%c0_147, %c0_148] : memref<4x32xf32, #tpu.memory_space<vmem>>, vector<4x32xf32>
      tpu.vector_store %arg10[%c0_147, %c0_148], %273 {strides = array<i32>} : memref<4x32xf32, #tpu.memory_space<vmem>>, vector<4x32xf32>,
    } else {
    }
    return
  }
  func.func @transform_0(%arg0: i32, %arg1: i32) -> (i32, i32, i32) {
    %c0_i32 = arith.constant 0 : i32
    %c0_i32_0 = arith.constant 0 : i32
    return %arg1, %arg0, %c0_i32 : i32, i32, i32
  }
  func.func @transform_1(%arg0: i32, %arg1: i32) -> (i32, i32) {
    %c0_i32 = arith.constant 0 : i32
    %c0_i32_0 = arith.constant 0 : i32
    return %arg0, %c0_i32 : i32, i32
  }
  func.func @transform_2(%arg0: i32, %arg1: i32) -> (i32, i32) {
    %c0_i32 = arith.constant 0 : i32
    %c0_i32_0 = arith.constant 0 : i32
    return %arg0, %c0_i32 : i32, i32
  }
  func.func @transform_3(%arg0: i32, %arg1: i32) -> (i32, i32) {
    %c0_i32 = arith.constant 0 : i32
    %c0_i32_0 = arith.constant 0 : i32
    %c0_i32_1 = arith.constant 0 : i32
    return %c0_i32, %c0_i32_0 : i32, i32
  }
  func.func @transform_4(%arg0: i32, %arg1: i32) -> (i32, i32) {
    %c0_i32 = arith.constant 0 : i32
    %c0_i32_0 = arith.constant 0 : i32
    %c0_i32_1 = arith.constant 0 : i32
    return %c0_i32, %c0_i32_0 : i32, i32
  }
  func.func @transform_5(%arg0: i32, %arg1: i32) -> (i32, i32) {
    %c0_i32 = arith.constant 0 : i32
    %c0_i32_0 = arith.constant 0 : i32
    %c0_i32_1 = arith.constant 0 : i32
    return %c0_i32, %c0_i32_0 : i32, i32
  }
  func.func @transform_6(%arg0: i32, %arg1: i32) -> (i32, i32, i32) {
    %c0_i32 = arith.constant 0 : i32
    %c0_i32_0 = arith.constant 0 : i32
    return %arg1, %arg0, %c0_i32 : i32, i32, i32
  }
  func.func @transform_7(%arg0: i32, %arg1: i32) -> (i32, i32) {
    %c0_i32 = arith.constant 0 : i32
    %c0_i32_0 = arith.constant 0 : i32
    return %arg0, %c0_i32 : i32, i32
  }
  func.func @transform_8(%arg0: i32, %arg1: i32) -> (i32, i32) {
    %c0_i32 = arith.constant 0 : i32
    %c0_i32_0 = arith.constant 0 : i32
    return %arg0, %c0_i32 : i32, i32
  }
}

</mosaic_0001>

<llo_original>
// kernel: rnn_model_forward.5
$region0: #{rnn_model_forward.5}
  #allocation0 [shape = 'u32[]', space=smem, size = 0x4, offset = 0x4, fixed_abs, tag = 'smem constant byte address 0x4 - core index']
  #allocation1 [shape = 'u32[144,128]{1,0:T(1,128)}', space=vmem, size = 0x12000, scoped, tag = 'internal scratch']
  %s0 = inlined_call_operand.vmem [shape: bf16[32,32], index: 0, kind: input, shape index: {}]
  %s1 = inlined_call_operand.vmem [shape: bf16[32,32], index: 1, kind: input, shape index: {}]
  %s2 = inlined_call_operand.vmem [shape: f32[1,32], index: 2, kind: input, shape index: {}]
  %s3 = inlined_call_operand.hbm [shape: f32[32,32], index: 3, kind: output, shape index: {}]
  %s4 = sld [smem:[#allocation0]]
  $region22: #{rnn_model_forward.5} parent=0
    _
  %s6 = ssub.s32 1, %s4
  %s7 = scalar_select 0, %s6, %s4
  $region1: #{rnn_model_forward.5} parent=0
    #allocation2 [shape = 'u8[16384]{0}', space=vmem, size = 0x4000, scoped, tag = 'output window, operand 0, single buffered']
    #allocation3 [shape = 's32[1]{0}', space=sflag, size = 0x4, scoped, tag = 'scoped memory for rnn_model_forward.5']
    %8 = vsyncpa [#allocation3], 0
    // Predicated region
    $region2: #{rnn_model_forward.5} parent=1 // pred_check
      _
    $region3: #{rnn_model_forward.5} parent=1 // pred_check_branch
      %10 = sbr.rel (0) target = $region5
    $region4: #{rnn_model_forward.5} parent=1 // pred_region
      _
    $region5: #{rnn_model_forward.5} parent=1 // pred_fallthru
      _
    // Predicated region
    $region6: #{rnn_model_forward.5} parent=1 // pred_check
      _
    $region7: #{rnn_model_forward.5} parent=1 // pred_check_branch
      %12 = sbr.rel (0) target = $region9
    $region8: #{rnn_model_forward.5} parent=1 // pred_region
      _
    $region9: #{rnn_model_forward.5} parent=1 // pred_fallthru
      _
    // Predicated region
    $region10: #{rnn_model_forward.5} parent=1 // pred_check
      _
    $region11: #{rnn_model_forward.5} parent=1 // pred_check_branch
      %14 = sbr.rel (0) target = $region13
    $region12: #{rnn_model_forward.5} parent=1 // pred_region
      _
    $region13: #{rnn_model_forward.5} parent=1 // pred_fallthru
      _
    %v16 = vld [vmem:[%s0] sm:$0xf]
    %v17 = vld [vmem:[%s0 + $0x4] sm:$0xf]
    %v18 = vld [vmem:[%s0 + $0x8] sm:$0xf]
    %v19 = vld [vmem:[%s0 + $0xc] sm:$0xf]
    %v20 = vld [vmem:[%s1] sm:$0xf]
    %v21 = vld [vmem:[%s1 + $0x4] sm:$0xf]
    %v22 = vld [vmem:[%s1 + $0x8] sm:$0xf]
    %v23 = vld [vmem:[%s1 + $0xc] sm:$0xf]
    %v24 = vld [vmem:[%s2] sm:$0x1]
    %v26 = vlaneseq
    %v27 = vshrl.u32 %v26, 7
    %v28 = vsub.s32 0, %v27
    %v29 = vrot.slane %v24, %v28
    %v35 = vunpack.c.l.b16 %v16
    %v36 = vunpack.c.l.b16 %v17
    %v37 = vunpack.c.l.b16 %v18
    %v38 = vunpack.c.l.b16 %v19
    %v39 = vpack.c.b16 %v36, %v35
    %v40 = vpack.c.b16 %v38, %v37
    %v45 = vunpack.c.l.b16 %v20
    %v46 = vunpack.c.l.b16 %v21
    %v47 = vunpack.c.l.b16 %v22
    %v48 = vunpack.c.l.b16 %v23
    %v49 = vpack.c.b16 %v46, %v45
    %v50 = vpack.c.b16 %v48, %v47
    %vm53 = vcmask 261120
    %v55 = vsel %vm53, %v39, 0
    %v58 = vsel %vm53, %v40, 0
    %60 = vmatprep.subr.bf16.mxu0 0
    %61 = vmatpush1.bf16.msra.mxu0 %v49
    %62 = vmatprep.subr.bf16.mxu0 0
    %63 = vmatpush1.bf16.msra.mxu0 %v50
    %64 = vmatprep.subr.bf16.mxu0 0
    %65 = vmatpush1.bf16.msra.mxu0 0
    %66 = vmatprep.subr.bf16.mxu0 0
    %67 = vmatpush1.bf16.msra.mxu0 0
    %68 = vmatprep.subr.bf16.mxu0 0
    %69 = vmatpush1.bf16.msra.mxu0 0
    %70 = vmatprep.subr.bf16.mxu0 0
    %71 = vmatpush1.bf16.msra.mxu0 0
    %72 = vmatprep.subr.bf16.mxu0 0
    %73 = vmatpush1.bf16.msra.mxu0 0
    %74 = vmatprep.subr.bf16.mxu0 0
    %75 = vmatpush1.bf16.msra.mxu0 0
    %76 = vmatprep.subr.bf16.mxu0 0
    %77 = vmatpush1.bf16.msra.mxu0 0
    %78 = vmatprep.subr.bf16.mxu0 0
    %79 = vmatpush1.bf16.msra.mxu0 0
    %80 = vmatprep.subr.bf16.mxu0 0
    %81 = vmatpush1.bf16.msra.mxu0 0
    %82 = vmatprep.subr.bf16.mxu0 0
    %83 = vmatpush1.bf16.msra.mxu0 0
    %84 = vmatprep.subr.bf16.mxu0 0
    %85 = vmatpush1.bf16.msra.mxu0 0
    %86 = vmatprep.subr.bf16.mxu0 0
    %87 = vmatpush1.bf16.msra.mxu0 0
    %88 = vmatprep.subr.bf16.mxu0 0
    %89 = vmatpush1.bf16.msra.mxu0 0
    %90 = vmatprep.subr.bf16.mxu0 0
    %91 = vmatpush1.bf16.msra.mxu0 0
    %92 = vmatprep.mubr.bf16.mxu0 0
    %93 = vmatmul.mubr.bf16.gmra.mrb[0].mxu0 %v55
    %v94 = vpop.f32.mrb[0].mxu0
    %v95 = vadd.f32 %v29, %v94
    %v96 = vpop.f32.mrb[0].mxu0
    %v97 = vpop.f32.mrb[0].mxu0
    %v98 = vadd.f32 %v29, %v97
    %v99 = vpop.f32.mrb[0].mxu0
    %100 = vmatprep.mubr.bf16.mxu0 0
    %101 = vmatmul.mubr.bf16.gmra.mrb[0].mxu0 %v58
    %v102 = vpop.f32.mrb[0].mxu0
    %v103 = vadd.f32 %v29, %v102
    %v104 = vpop.f32.mrb[0].mxu0
    %v105 = vpop.f32.mrb[0].mxu0
    %v106 = vadd.f32 %v29, %v105
    %v107 = vpop.f32.mrb[0].mxu0
    %108 = vdwg.mxu0
    %109 = vst.msk [vmem:[#allocation2] sm:$0xff] %vm53, %v95
    %110 = vst.msk [vmem:[#allocation2 + $0x8] sm:$0xff] %vm53, %v98
    %111 = vst.msk [vmem:[#allocation2 + $0x10] sm:$0xff] %vm53, %v103
    %112 = vst.msk [vmem:[#allocation2 + $0x18] sm:$0xff] %vm53, %v106
    // Predicated region
    $region14: #{rnn_model_forward.5} parent=1 // pred_check
      _
    $region15: #{rnn_model_forward.5} parent=1 // pred_check_branch
      %114 = sbr.rel (0) target = $region17
    $region16: #{rnn_model_forward.5} parent=1 // pred_region
      %s116 = ssub.s32 512, 512
      %117 = vsyncadd [#allocation3], %s116
      %s118 = sshll.u32 [#allocation2], 4
      %s119 = int_to_ptr.vmem [resolvable:$true] %s118
      %124 = dma.vmem_to_hbm [thread:$0]  %s119, 512, %s3, [#allocation3], 128, 128, 8
    $region17: #{rnn_model_forward.5} parent=1 // pred_fallthru
      _
    // Predicated region
    $region18: #{rnn_model_forward.5} parent=1 // pred_check
      _
    $region19: #{rnn_model_forward.5} parent=1 // pred_check_branch
      %126 = sbr.rel (0) target = $region21
    $region20: #{rnn_model_forward.5} parent=1 // pred_region
      %127 = dma.done [#allocation3], 512
    $region21: #{rnn_model_forward.5} parent=1 // pred_fallthru
      _
    %128 = vsyncpa [#allocation3], 1

// kernel: rnn_model_forward.3
$region0: #{rnn_model_forward.3}
  #allocation0 [shape = 'u32[]', space=smem, size = 0x4, offset = 0x4, fixed_abs, tag = 'smem constant byte address 0x4 - core index']
  #allocation1 [shape = 'u32[144,128]{1,0:T(1,128)}', space=vmem, size = 0x12000, scoped, tag = 'internal scratch']
  #allocation2 [shape = 'f32[8,4,128]{2,1,0:T(4,128)}', space=vmem, size = 0x4000, scoped, tag = 'scratch operand']
  #allocation3 [shape = 'f32[4,32]{1,0:T(4,128)}', space=vmem, size = 0x800, scoped, tag = 'scratch operand']
  #allocation4 [shape = 'f32[4,32]{1,0:T(4,128)}', space=vmem, size = 0x800, scoped, tag = 'scratch operand']
  %s0 = inlined_call_operand.vmem [shape: bf16[8,4,32], index: 0, kind: input, shape index: {}]
  %s1 = inlined_call_operand.vmem [shape: f32[4,32], index: 1, kind: input, shape index: {}]
  %s2 = inlined_call_operand.vmem [shape: f32[4,32], index: 2, kind: input, shape index: {}]
  %s3 = inlined_call_operand.vmem [shape: bf16[32,128], index: 3, kind: input, shape index: {}]
  %s4 = inlined_call_operand.vmem [shape: bf16[32,128], index: 4, kind: input, shape index: {}]
  %s5 = inlined_call_operand.vmem [shape: f32[1,128], index: 5, kind: input, shape index: {}]
  %s6 = inlined_call_operand.vmem [shape: bf16[8,4,32], index: 6, kind: output, shape index: {0}]
  %s7 = inlined_call_operand.vmem [shape: f32[4,32], index: 7, kind: output, shape index: {1}]
  %s8 = inlined_call_operand.vmem [shape: f32[4,32], index: 8, kind: output, shape index: {2}]
  %9 = xla_tuple %s6, %s7, %s8
  %s10 = sld [smem:[#allocation0]]
  $region58: #{rnn_model_forward.3} parent=0
    _
  %s12 = ssub.s32 1, %s10
  %s13 = scalar_select 0, %s12, %s10
  // Predicated region
  $region2: #{rnn_model_forward.3} parent=0 // pred_check
    _
  $region3: #{rnn_model_forward.3} parent=0 // pred_check_branch
    %15 = sbr.rel (0) target = $region5
  $region4: #{rnn_model_forward.3} parent=0 // pred_region
    _
  $region5: #{rnn_model_forward.3} parent=0 // pred_fallthru
    _
  // Predicated region
  $region6: #{rnn_model_forward.3} parent=0 // pred_check
    _
  $region7: #{rnn_model_forward.3} parent=0 // pred_check_branch
    %17 = sbr.rel (0) target = $region9
  $region8: #{rnn_model_forward.3} parent=0 // pred_region
    _
  $region9: #{rnn_model_forward.3} parent=0 // pred_fallthru
    _
  // Predicated region
  $region10: #{rnn_model_forward.3} parent=0 // pred_check
    _
  $region11: #{rnn_model_forward.3} parent=0 // pred_check_branch
    %19 = sbr.rel (0) target = $region13
  $region12: #{rnn_model_forward.3} parent=0 // pred_region
    _
  $region13: #{rnn_model_forward.3} parent=0 // pred_fallthru
    _
  // Predicated region
  $region14: #{rnn_model_forward.3} parent=0 // pred_check
    _
  $region15: #{rnn_model_forward.3} parent=0 // pred_check_branch
    %21 = sbr.rel (0) target = $region17
  $region16: #{rnn_model_forward.3} parent=0 // pred_region
    _
  $region17: #{rnn_model_forward.3} parent=0 // pred_fallthru
    _
  // Predicated region
  $region18: #{rnn_model_forward.3} parent=0 // pred_check
    _
  $region19: #{rnn_model_forward.3} parent=0 // pred_check_branch
    %23 = sbr.rel (0) target = $region21
  $region20: #{rnn_model_forward.3} parent=0 // pred_region
    _
  $region21: #{rnn_model_forward.3} parent=0 // pred_fallthru
    _
  // Predicated region
  $region22: #{rnn_model_forward.3} parent=0 // pred_check
    _
  $region23: #{rnn_model_forward.3} parent=0 // pred_check_branch
    %25 = sbr.rel (0) target = $region25
  $region24: #{rnn_model_forward.3} parent=0 // pred_region
    _
  $region25: #{rnn_model_forward.3} parent=0 // pred_fallthru
    _
  %p27 = scmp.eq.s32.totalorder 0, 0
  // Predicated region
  $region26: #{rnn_model_forward.3} parent=0 // pred_check
    %p28 = pneg %p27
  $region27: #{rnn_model_forward.3} parent=0 // pred_check_branch
    %30 = sbr.rel (%p28) target = $region29
  $region28: #{rnn_model_forward.3} parent=0 // pred_region
    %v31 = vld [vmem:[%s1] sm:$0xf]
    %vm32 = vcmask 257024
    %33 = vst.msk [vmem:[#allocation3] sm:$0xf] %vm32, %v31
    %v34 = vld [vmem:[%s2] sm:$0xf]
    %35 = vst.msk [vmem:[#allocation4] sm:$0xf] %vm32, %v34
  $region29: #{rnn_model_forward.3} parent=0 // pred_fallthru
    _
  %v36 = vld [vmem:[%s0] sm:$0x3]
  %v37 = vld [vmem:[%s0 + $0x2] sm:$0x3]
  %v38 = vld [vmem:[%s0 + $0x4] sm:$0x3]
  %v39 = vld [vmem:[%s0 + $0x6] sm:$0x3]
  %v40 = vld [vmem:[%s0 + $0x8] sm:$0x3]
  %v41 = vld [vmem:[%s0 + $0xa] sm:$0x3]
  %v42 = vld [vmem:[%s0 + $0xc] sm:$0x3]
  %v43 = vld [vmem:[%s0 + $0xe] sm:$0x3]
  %v44 = vld [vmem:[%s3] sm:$0xf]
  %v45 = vld [vmem:[%s3 + $0x4] sm:$0xf]
  %v46 = vld [vmem:[%s3 + $0x8] sm:$0xf]
  %v47 = vld [vmem:[%s3 + $0xc] sm:$0xf]
  %v48 = vld [vmem:[%s5] sm:$0x1]
  %v50 = vlaneseq
  %v51 = vshrl.u32 %v50, 7
  %v52 = vsub.s32 0, %v51
  %v53 = vrot.slane %v48, %v52
  %v63 = vcombine.low %v36, %v37
  %v64 = vcombine.low %v38, %v39
  %v66 = vunpack.c.l.s4 1983009808
  %v67 = vunpack.c.0.s8 %v66
  %v68 = vlaneseq
  %v69 = vshrl.u32 %v68, 7
  %v70 = vsub.s32 %v67, %v69
  %v71 = vrot.slane %v63, %v70
  %v73 = vunpack.c.l.s4 1983009808
  %v74 = vunpack.c.0.s8 %v73
  %v75 = vlaneseq
  %v76 = vshrl.u32 %v75, 7
  %v77 = vsub.s32 %v74, %v76
  %v78 = vrot.slane %v64, %v77
  %v79 = vcombine.low %v71, %v78
  %v80 = vcombine.low %v40, %v41
  %v81 = vcombine.low %v42, %v43
  %v83 = vunpack.c.l.s4 1983009808
  %v84 = vunpack.c.0.s8 %v83
  %v85 = vlaneseq
  %v86 = vshrl.u32 %v85, 7
  %v87 = vsub.s32 %v84, %v86
  %v88 = vrot.slane %v80, %v87
  %v90 = vunpack.c.l.s4 1983009808
  %v91 = vunpack.c.0.s8 %v90
  %v92 = vlaneseq
  %v93 = vshrl.u32 %v92, 7
  %v94 = vsub.s32 %v91, %v93
  %v95 = vrot.slane %v81, %v94
  %v96 = vcombine.low %v88, %v95
  %v101 = vunpack.c.l.b16 %v44
  %v102 = vunpack.c.l.b16 %v45
  %v103 = vunpack.c.l.b16 %v46
  %v104 = vunpack.c.l.b16 %v47
  %v105 = vpack.c.b16 %v102, %v101
  %v106 = vpack.c.b16 %v104, %v103
  %vm109 = vcmask 261120
  %v111 = vsel %vm109, %v79, 0
  %v114 = vsel %vm109, %v96, 0
  %116 = vmatprep.subr.bf16.mxu0 0
  %117 = vmatpush1.bf16.msra.mxu0 %v105
  %118 = vmatprep.subr.bf16.mxu0 0
  %119 = vmatpush1.bf16.msra.mxu0 %v106
  %120 = vmatprep.subr.bf16.mxu0 0
  %121 = vmatpush1.bf16.msra.mxu0 0
  %122 = vmatprep.subr.bf16.mxu0 0
  %123 = vmatpush1.bf16.msra.mxu0 0
  %124 = vmatprep.subr.bf16.mxu0 0
  %125 = vmatpush1.bf16.msra.mxu0 0
  %126 = vmatprep.subr.bf16.mxu0 0
  %127 = vmatpush1.bf16.msra.mxu0 0
  %128 = vmatprep.subr.bf16.mxu0 0
  %129 = vmatpush1.bf16.msra.mxu0 0
  %130 = vmatprep.subr.bf16.mxu0 0
  %131 = vmatpush1.bf16.msra.mxu0 0
  %132 = vmatprep.subr.bf16.mxu0 0
  %133 = vmatpush1.bf16.msra.mxu0 0
  %134 = vmatprep.subr.bf16.mxu0 0
  %135 = vmatpush1.bf16.msra.mxu0 0
  %136 = vmatprep.subr.bf16.mxu0 0
  %137 = vmatpush1.bf16.msra.mxu0 0
  %138 = vmatprep.subr.bf16.mxu0 0
  %139 = vmatpush1.bf16.msra.mxu0 0
  %140 = vmatprep.subr.bf16.mxu0 0
  %141 = vmatpush1.bf16.msra.mxu0 0
  %142 = vmatprep.subr.bf16.mxu0 0
  %143 = vmatpush1.bf16.msra.mxu0 0
  %144 = vmatprep.subr.bf16.mxu0 0
  %145 = vmatpush1.bf16.msra.mxu0 0
  %146 = vmatprep.subr.bf16.mxu0 0
  %147 = vmatpush1.bf16.msra.mxu0 0
  %148 = vmatprep.mubr.bf16.mxu0 0
  %149 = vmatmul.mubr.bf16.gmra.mrb[0].mxu0 %v111
  %v150 = vpop.f32.mrb[0].mxu0
  %v151 = vadd.f32 %v53, %v150
  %v152 = vpop.f32.mrb[0].mxu0
  %v153 = vpop.f32.mrb[0].mxu0
  %v154 = vadd.f32 %v53, %v153
  %v155 = vpop.f32.mrb[0].mxu0
  %156 = vmatprep.mubr.bf16.mxu0 0
  %157 = vmatmul.mubr.bf16.gmra.mrb[0].mxu0 %v114
  %v158 = vpop.f32.mrb[0].mxu0
  %v159 = vadd.f32 %v53, %v158
  %v160 = vpop.f32.mrb[0].mxu0
  %v161 = vpop.f32.mrb[0].mxu0
  %v162 = vadd.f32 %v53, %v161
  %v163 = vpop.f32.mrb[0].mxu0
  %164 = vdwg.mxu0
  %v169 = vcombine.high %v151, %v151
  %v170 = vcombine.high %v154, %v154
  %v171 = vcombine.high %v159, %v159
  %v172 = vcombine.high %v162, %v162
  %177 = vst [vmem:[#allocation2] sm:$0xf] %v151
  %178 = vst [vmem:[#allocation2 + $0x4] sm:$0xf] %v169
  %179 = vst [vmem:[#allocation2 + $0x8] sm:$0xf] %v154
  %180 = vst [vmem:[#allocation2 + $0xc] sm:$0xf] %v170
  %181 = vst [vmem:[#allocation2 + $0x10] sm:$0xf] %v159
  %182 = vst [vmem:[#allocation2 + $0x14] sm:$0xf] %v171
  %183 = vst [vmem:[#allocation2 + $0x18] sm:$0xf] %v162
  %184 = vst [vmem:[#allocation2 + $0x1c] sm:$0xf] %v172
  %v185 = vld [vmem:[#allocation3] sm:$0xf]
  %v186 = vld [vmem:[#allocation4] sm:$0xf]
  %v187 = vld [vmem:[#allocation2] sm:$0xf]
  %v188 = vpack.c.bf16 %v185, %v185
  %v189 = vld [vmem:[%s4] sm:$0xf]
  %v190 = vld [vmem:[%s4 + $0x4] sm:$0xf]
  %v191 = vld [vmem:[%s4 + $0x8] sm:$0xf]
  %v192 = vld [vmem:[%s4 + $0xc] sm:$0xf]
  %v197 = vunpack.c.l.b16 %v189
  %v198 = vunpack.c.l.b16 %v190
  %v199 = vunpack.c.l.b16 %v191
  %v200 = vunpack.c.l.b16 %v192
  %v201 = vpack.c.b16 %v198, %v197
  %v202 = vpack.c.b16 %v200, %v199
  %v206 = vsel %vm109, %v188, 0
  %208 = vmatprep.subr.bf16.mxu0 0
  %209 = vmatpush1.bf16.msra.mxu0 %v201
  %210 = vmatprep.subr.bf16.mxu0 0
  %211 = vmatpush1.bf16.msra.mxu0 %v202
  %212 = vmatprep.subr.bf16.mxu0 0
  %213 = vmatpush1.bf16.msra.mxu0 0
  %214 = vmatprep.subr.bf16.mxu0 0
  %215 = vmatpush1.bf16.msra.mxu0 0
  %216 = vmatprep.subr.bf16.mxu0 0
  %217 = vmatpush1.bf16.msra.mxu0 0
  %218 = vmatprep.subr.bf16.mxu0 0
  %219 = vmatpush1.bf16.msra.mxu0 0
  %220 = vmatprep.subr.bf16.mxu0 0
  %221 = vmatpush1.bf16.msra.mxu0 0
  %222 = vmatprep.subr.bf16.mxu0 0
  %223 = vmatpush1.bf16.msra.mxu0 0
  %224 = vmatprep.subr.bf16.mxu0 0
  %225 = vmatpush1.bf16.msra.mxu0 0
  %226 = vmatprep.subr.bf16.mxu0 0
  %227 = vmatpush1.bf16.msra.mxu0 0
  %228 = vmatprep.subr.bf16.mxu0 0
  %229 = vmatpush1.bf16.msra.mxu0 0
  %230 = vmatprep.subr.bf16.mxu0 0
  %231 = vmatpush1.bf16.msra.mxu0 0
  %232 = vmatprep.subr.bf16.mxu0 0
  %233 = vmatpush1.bf16.msra.mxu0 0
  %234 = vmatprep.subr.bf16.mxu0 0
  %235 = vmatpush1.bf16.msra.mxu0 0
  %236 = vmatprep.subr.bf16.mxu0 0
  %237 = vmatpush1.bf16.msra.mxu0 0
  %238 = vmatprep.subr.bf16.mxu0 0
  %239 = vmatpush1.bf16.msra.mxu0 0
  %240 = vmatprep.mubr.bf16.mxu0 0
  %241 = vmatmul.mubr.bf16.gmra.mrb[0].mxu0 %v206
  %v242 = vpop.f32.mrb[0].mxu0
  %v243 = vadd.f32 0.0, %v242
  %v244 = vpop.f32.mrb[0].mxu0
  %v245 = vpop.f32.mrb[0].mxu0
  %v246 = vpop.f32.mrb[0].mxu0
  %247 = vdwg.mxu0
  %v248 = vadd.f32 %v187, %v243
  %v249 = vxor.u32 %v248, 2147483648
  %v250 = vmul.f32 %v249, 1.442695
  %v251 = vpow.pop %v250
  %v252 = vadd.f32 %v251, 1.0
  %v253 = vrcp.pop %v252
  %v254 = vmul.f32 1.0, %v253
  %v255 = vtanh.pop %v248
  %257 = vrot.lane.b32.xlu0 %v186, 32
  %v258 = vpop.permute.xlu0 %257
  %v260 = vmul.f32 %v254, %v258
  %262 = vrot.lane.b32.xlu0 %v255, 32
  %v263 = vpop.permute.xlu0 %262
  %v265 = vmul.f32 %v254, %v263
  %267 = vrot.lane.b32.xlu0 %v265, 32
  %v268 = vpop.permute.xlu0 %267
  %v270 = vadd.f32 %v260, %v268
  %v271 = vtanh.pop %v270
  %273 = vrot.lane.b32.xlu0 %v271, 32
  %v274 = vpop.permute.xlu0 %273
  %v276 = vmul.f32 %v254, %v274
  %278 = vrot.lane.b32.xlu0 %v276, 64
  %v279 = vpop.permute.xlu0 %278
  %vm281 = vcmask 257024
  %282 = vst.msk [vmem:[#allocation3] sm:$0xf] %vm281, %v279
  %284 = vrot.lane.b32.xlu0 %v270, 96
  %v285 = vpop.permute.xlu0 %284
  %287 = vst.msk [vmem:[#allocation4] sm:$0xf] %vm281, %v285
  %v288 = vpack.c.bf16 %v276, %v276
  %v291 = vunpack.c.l.s4 1983009808
  %v292 = vunpack.c.0.s8 %v291
  %v293 = vlaneseq
  %v294 = vshrl.u32 %v293, 7
  %v295 = vsub.s32 %v292, %v294
  %v296 = vrot.slane %v288, %v295
  %297 = vrot.lane.b32.xlu0 %v296, 64
  %v298 = vpop.permute.xlu0 %297
  %vm300 = vcmask 254976
  %301 = vst.msk [vmem:[%s6] sm:$0x3] %vm300, %v298
  %v302 = vld [vmem:[#allocation3] sm:$0xf]
  %v303 = vld [vmem:[#allocation4] sm:$0xf]
  %s304 = scalar_lea.vmem [#allocation2], 4
  %v305 = vld [vmem:[%s304] sm:$0xf]
  %v306 = vpack.c.bf16 %v302, %v302
  %v307 = vld [vmem:[%s4] sm:$0xf]
  %v308 = vld [vmem:[%s4 + $0x4] sm:$0xf]
  %v309 = vld [vmem:[%s4 + $0x8] sm:$0xf]
  %v310 = vld [vmem:[%s4 + $0xc] sm:$0xf]
  %v315 = vunpack.c.l.b16 %v307
  %v316 = vunpack.c.l.b16 %v308
  %v317 = vunpack.c.l.b16 %v309
  %v318 = vunpack.c.l.b16 %v310
  %v319 = vpack.c.b16 %v316, %v315
  %v320 = vpack.c.b16 %v318, %v317
  %v324 = vsel %vm109, %v306, 0
  %326 = vmatprep.subr.bf16.mxu0 0
  %327 = vmatpush1.bf16.msra.mxu0 %v319
  %328 = vmatprep.subr.bf16.mxu0 0
  %329 = vmatpush1.bf16.msra.mxu0 %v320
  %330 = vmatprep.subr.bf16.mxu0 0
  %331 = vmatpush1.bf16.msra.mxu0 0
  %332 = vmatprep.subr.bf16.mxu0 0
  %333 = vmatpush1.bf16.msra.mxu0 0
  %334 = vmatprep.subr.bf16.mxu0 0
  %335 = vmatpush1.bf16.msra.mxu0 0
  %336 = vmatprep.subr.bf16.mxu0 0
  %337 = vmatpush1.bf16.msra.mxu0 0
  %338 = vmatprep.subr.bf16.mxu0 0
  %339 = vmatpush1.bf16.msra.mxu0 0
  %340 = vmatprep.subr.bf16.mxu0 0
  %341 = vmatpush1.bf16.msra.mxu0 0
  %342 = vmatprep.subr.bf16.mxu0 0
  %343 = vmatpush1.bf16.msra.mxu0 0
  %344 = vmatprep.subr.bf16.mxu0 0
  %345 = vmatpush1.bf16.msra.mxu0 0
  %346 = vmatprep.subr.bf16.mxu0 0
  %347 = vmatpush1.bf16.msra.mxu0 0
  %348 = vmatprep.subr.bf16.mxu0 0
  %349 = vmatpush1.bf16.msra.mxu0 0
  %350 = vmatprep.subr.bf16.mxu0 0
  %351 = vmatpush1.bf16.msra.mxu0 0
  %352 = vmatprep.subr.bf16.mxu0 0
  %353 = vmatpush1.bf16.msra.mxu0 0
  %354 = vmatprep.subr.bf16.mxu0 0
  %355 = vmatpush1.bf16.msra.mxu0 0
  %356 = vmatprep.subr.bf16.mxu0 0
  %357 = vmatpush1.bf16.msra.mxu0 0
  %358 = vmatprep.mubr.bf16.mxu0 0
  %359 = vmatmul.mubr.bf16.gmra.mrb[0].mxu0 %v324
  %v360 = vpop.f32.mrb[0].mxu0
  %v361 = vadd.f32 0.0, %v360
  %v362 = vpop.f32.mrb[0].mxu0
  %v363 = vpop.f32.mrb[0].mxu0
  %v364 = vpop.f32.mrb[0].mxu0
  %365 = vdwg.mxu0
  %v366 = vadd.f32 %v305, %v361
  %v367 = vxor.u32 %v366, 2147483648
  %v368 = vmul.f32 %v367, 1.442695
  %v369 = vpow.pop %v368
  %v370 = vadd.f32 %v369, 1.0
  %v371 = vrcp.pop %v370
  %v372 = vmul.f32 1.0, %v371
  %v373 = vtanh.pop %v366
  %375 = vrot.lane.b32.xlu0 %v303, 32
  %v376 = vpop.permute.xlu0 %375
  %v378 = vmul.f32 %v372, %v376
  %380 = vrot.lane.b32.xlu0 %v373, 32
  %v381 = vpop.permute.xlu0 %380
  %v383 = vmul.f32 %v372, %v381
  %385 = vrot.lane.b32.xlu0 %v383, 32
  %v386 = vpop.permute.xlu0 %385
  %v388 = vadd.f32 %v378, %v386
  %v389 = vtanh.pop %v388
  %391 = vrot.lane.b32.xlu0 %v389, 32
  %v392 = vpop.permute.xlu0 %391
  %v394 = vmul.f32 %v372, %v392
  %396 = vrot.lane.b32.xlu0 %v394, 64
  %v397 = vpop.permute.xlu0 %396
  %399 = vst.msk [vmem:[#allocation3] sm:$0xf] %vm281, %v397
  %401 = vrot.lane.b32.xlu0 %v388, 96
  %v402 = vpop.permute.xlu0 %401
  %404 = vst.msk [vmem:[#allocation4] sm:$0xf] %vm281, %v402
  %v405 = vpack.c.bf16 %v394, %v394
  %v408 = vunpack.c.l.s4 1983009808
  %v409 = vunpack.c.0.s8 %v408
  %v410 = vlaneseq
  %v411 = vshrl.u32 %v410, 7
  %v412 = vsub.s32 %v409, %v411
  %v413 = vrot.slane %v405, %v412
  %414 = vrot.lane.b32.xlu0 %v413, 64
  %v415 = vpop.permute.xlu0 %414
  %s417 = scalar_lea.vmem %s6, 2
  %418 = vst.msk [vmem:[%s417] sm:$0x3] %vm300, %v415
  %v419 = vld [vmem:[#allocation3] sm:$0xf]
  %v420 = vld [vmem:[#allocation4] sm:$0xf]
  %s421 = scalar_lea.vmem [#allocation2], 8
  %v422 = vld [vmem:[%s421] sm:$0xf]
  %v423 = vpack.c.bf16 %v419, %v419
  %v424 = vld [vmem:[%s4] sm:$0xf]
  %v425 = vld [vmem:[%s4 + $0x4] sm:$0xf]
  %v426 = vld [vmem:[%s4 + $0x8] sm:$0xf]
  %v427 = vld [vmem:[%s4 + $0xc] sm:$0xf]
  %v432 = vunpack.c.l.b16 %v424
  %v433 = vunpack.c.l.b16 %v425
  %v434 = vunpack.c.l.b16 %v426
  %v435 = vunpack.c.l.b16 %v427
  %v436 = vpack.c.b16 %v433, %v432
  %v437 = vpack.c.b16 %v435, %v434
  %v441 = vsel %vm109, %v423, 0
  %443 = vmatprep.subr.bf16.mxu0 0
  %444 = vmatpush1.bf16.msra.mxu0 %v436
  %445 = vmatprep.subr.bf16.mxu0 0
  %446 = vmatpush1.bf16.msra.mxu0 %v437
  %447 = vmatprep.subr.bf16.mxu0 0
  %448 = vmatpush1.bf16.msra.mxu0 0
  %449 = vmatprep.subr.bf16.mxu0 0
  %450 = vmatpush1.bf16.msra.mxu0 0
  %451 = vmatprep.subr.bf16.mxu0 0
  %452 = vmatpush1.bf16.msra.mxu0 0
  %453 = vmatprep.subr.bf16.mxu0 0
  %454 = vmatpush1.bf16.msra.mxu0 0
  %455 = vmatprep.subr.bf16.mxu0 0
  %456 = vmatpush1.bf16.msra.mxu0 0
  %457 = vmatprep.subr.bf16.mxu0 0
  %458 = vmatpush1.bf16.msra.mxu0 0
  %459 = vmatprep.subr.bf16.mxu0 0
  %460 = vmatpush1.bf16.msra.mxu0 0
  %461 = vmatprep.subr.bf16.mxu0 0
  %462 = vmatpush1.bf16.msra.mxu0 0
  %463 = vmatprep.subr.bf16.mxu0 0
  %464 = vmatpush1.bf16.msra.mxu0 0
  %465 = vmatprep.subr.bf16.mxu0 0
  %466 = vmatpush1.bf16.msra.mxu0 0
  %467 = vmatprep.subr.bf16.mxu0 0
  %468 = vmatpush1.bf16.msra.mxu0 0
  %469 = vmatprep.subr.bf16.mxu0 0
  %470 = vmatpush1.bf16.msra.mxu0 0
  %471 = vmatprep.subr.bf16.mxu0 0
  %472 = vmatpush1.bf16.msra.mxu0 0
  %473 = vmatprep.subr.bf16.mxu0 0
  %474 = vmatpush1.bf16.msra.mxu0 0
  %475 = vmatprep.mubr.bf16.mxu0 0
  %476 = vmatmul.mubr.bf16.gmra.mrb[0].mxu0 %v441
  %v477 = vpop.f32.mrb[0].mxu0
  %v478 = vadd.f32 0.0, %v477
  %v479 = vpop.f32.mrb[0].mxu0
  %v480 = vpop.f32.mrb[0].mxu0
  %v481 = vpop.f32.mrb[0].mxu0
  %482 = vdwg.mxu0
  %v483 = vadd.f32 %v422, %v478
  %v484 = vxor.u32 %v483, 2147483648
  %v485 = vmul.f32 %v484, 1.442695
  %v486 = vpow.pop %v485
  %v487 = vadd.f32 %v486, 1.0
  %v488 = vrcp.pop %v487
  %v489 = vmul.f32 1.0, %v488
  %v490 = vtanh.pop %v483
  %492 = vrot.lane.b32.xlu0 %v420, 32
  %v493 = vpop.permute.xlu0 %492
  %v495 = vmul.f32 %v489, %v493
  %497 = vrot.lane.b32.xlu0 %v490, 32
  %v498 = vpop.permute.xlu0 %497
  %v500 = vmul.f32 %v489, %v498
  %502 = vrot.lane.b32.xlu0 %v500, 32
  %v503 = vpop.permute.xlu0 %502
  %v505 = vadd.f32 %v495, %v503
  %v506 = vtanh.pop %v505
  %508 = vrot.lane.b32.xlu0 %v506, 32
  %v509 = vpop.permute.xlu0 %508
  %v511 = vmul.f32 %v489, %v509
  %513 = vrot.lane.b32.xlu0 %v511, 64
  %v514 = vpop.permute.xlu0 %513
  %516 = vst.msk [vmem:[#allocation3] sm:$0xf] %vm281, %v514
  %518 = vrot.lane.b32.xlu0 %v505, 96
  %v519 = vpop.permute.xlu0 %518
  %521 = vst.msk [vmem:[#allocation4] sm:$0xf] %vm281, %v519
  %v522 = vpack.c.bf16 %v511, %v511
  %v525 = vunpack.c.l.s4 1983009808
  %v526 = vunpack.c.0.s8 %v525
  %v527 = vlaneseq
  %v528 = vshrl.u32 %v527, 7
  %v529 = vsub.s32 %v526, %v528
  %v530 = vrot.slane %v522, %v529
  %531 = vrot.lane.b32.xlu0 %v530, 64
  %v532 = vpop.permute.xlu0 %531
  %s534 = scalar_lea.vmem %s6, 4
  %535 = vst.msk [vmem:[%s534] sm:$0x3] %vm300, %v532
  %v536 = vld [vmem:[#allocation3] sm:$0xf]
  %v537 = vld [vmem:[#allocation4] sm:$0xf]
  %s538 = scalar_lea.vmem [#allocation2], 12
  %v539 = vld [vmem:[%s538] sm:$0xf]
  %v540 = vpack.c.bf16 %v536, %v536
  %v541 = vld [vmem:[%s4] sm:$0xf]
  %v542 = vld [vmem:[%s4 + $0x4] sm:$0xf]
  %v543 = vld [vmem:[%s4 + $0x8] sm:$0xf]
  %v544 = vld [vmem:[%s4 + $0xc] sm:$0xf]
  %v549 = vunpack.c.l.b16 %v541
  %v550 = vunpack.c.l.b16 %v542
  %v551 = vunpack.c.l.b16 %v543
  %v552 = vunpack.c.l.b16 %v544
  %v553 = vpack.c.b16 %v550, %v549
  %v554 = vpack.c.b16 %v552, %v551
  %v558 = vsel %vm109, %v540, 0
  %560 = vmatprep.subr.bf16.mxu0 0
  %561 = vmatpush1.bf16.msra.mxu0 %v553
  %562 = vmatprep.subr.bf16.mxu0 0
  %563 = vmatpush1.bf16.msra.mxu0 %v554
  %564 = vmatprep.subr.bf16.mxu0 0
  %565 = vmatpush1.bf16.msra.mxu0 0
  %566 = vmatprep.subr.bf16.mxu0 0
  %567 = vmatpush1.bf16.msra.mxu0 0
  %568 = vmatprep.subr.bf16.mxu0 0
  %569 = vmatpush1.bf16.msra.mxu0 0
  %570 = vmatprep.subr.bf16.mxu0 0
  %571 = vmatpush1.bf16.msra.mxu0 0
  %572 = vmatprep.subr.bf16.mxu0 0
  %573 = vmatpush1.bf16.msra.mxu0 0
  %574 = vmatprep.subr.bf16.mxu0 0
  %575 = vmatpush1.bf16.msra.mxu0 0
  %576 = vmatprep.subr.bf16.mxu0 0
  %577 = vmatpush1.bf16.msra.mxu0 0
  %578 = vmatprep.subr.bf16.mxu0 0
  %579 = vmatpush1.bf16.msra.mxu0 0
  %580 = vmatprep.subr.bf16.mxu0 0
  %581 = vmatpush1.bf16.msra.mxu0 0
  %582 = vmatprep.subr.bf16.mxu0 0
  %583 = vmatpush1.bf16.msra.mxu0 0
  %584 = vmatprep.subr.bf16.mxu0 0
  %585 = vmatpush1.bf16.msra.mxu0 0
  %586 = vmatprep.subr.bf16.mxu0 0
  %587 = vmatpush1.bf16.msra.mxu0 0
  %588 = vmatprep.subr.bf16.mxu0 0
  %589 = vmatpush1.bf16.msra.mxu0 0
  %590 = vmatprep.subr.bf16.mxu0 0
  %591 = vmatpush1.bf16.msra.mxu0 0
  %592 = vmatprep.mubr.bf16.mxu0 0
  %593 = vmatmul.mubr.bf16.gmra.mrb[0].mxu0 %v558
  %v594 = vpop.f32.mrb[0].mxu0
  %v595 = vadd.f32 0.0, %v594
  %v596 = vpop.f32.mrb[0].mxu0
  %v597 = vpop.f32.mrb[0].mxu0
  %v598 = vpop.f32.mrb[0].mxu0
  %599 = vdwg.mxu0
  %v600 = vadd.f32 %v539, %v595
  %v601 = vxor.u32 %v600, 2147483648
  %v602 = vmul.f32 %v601, 1.442695
  %v603 = vpow.pop %v602
  %v604 = vadd.f32 %v603, 1.0
  %v605 = vrcp.pop %v604
  %v606 = vmul.f32 1.0, %v605
  %v607 = vtanh.pop %v600
  %609 = vrot.lane.b32.xlu0 %v537, 32
  %v610 = vpop.permute.xlu0 %609
  %v612 = vmul.f32 %v606, %v610
  %614 = vrot.lane.b32.xlu0 %v607, 32
  %v615 = vpop.permute.xlu0 %614
  %v617 = vmul.f32 %v606, %v615
  %619 = vrot.lane.b32.xlu0 %v617, 32
  %v620 = vpop.permute.xlu0 %619
  %v622 = vadd.f32 %v612, %v620
  %v623 = vtanh.pop %v622
  %625 = vrot.lane.b32.xlu0 %v623, 32
  %v626 = vpop.permute.xlu0 %625
  %v628 = vmul.f32 %v606, %v626
  %630 = vrot.lane.b32.xlu0 %v628, 64
  %v631 = vpop.permute.xlu0 %630
  %633 = vst.msk [vmem:[#allocation3] sm:$0xf] %vm281, %v631
  %635 = vrot.lane.b32.xlu0 %v622, 96
  %v636 = vpop.permute.xlu0 %635
  %638 = vst.msk [vmem:[#allocation4] sm:$0xf] %vm281, %v636
  %v639 = vpack.c.bf16 %v628, %v628
  %v642 = vunpack.c.l.s4 1983009808
  %v643 = vunpack.c.0.s8 %v642
  %v644 = vlaneseq
  %v645 = vshrl.u32 %v644, 7
  %v646 = vsub.s32 %v643, %v645
  %v647 = vrot.slane %v639, %v646
  %648 = vrot.lane.b32.xlu0 %v647, 64
  %v649 = vpop.permute.xlu0 %648
  %s651 = scalar_lea.vmem %s6, 6
  %652 = vst.msk [vmem:[%s651] sm:$0x3] %vm300, %v649
  %v653 = vld [vmem:[#allocation3] sm:$0xf]
  %v654 = vld [vmem:[#allocation4] sm:$0xf]
  %s655 = scalar_lea.vmem [#allocation2], 16
  %v656 = vld [vmem:[%s655] sm:$0xf]
  %v657 = vpack.c.bf16 %v653, %v653
  %v658 = vld [vmem:[%s4] sm:$0xf]
  %v659 = vld [vmem:[%s4 + $0x4] sm:$0xf]
  %v660 = vld [vmem:[%s4 + $0x8] sm:$0xf]
  %v661 = vld [vmem:[%s4 + $0xc] sm:$0xf]
  %v666 = vunpack.c.l.b16 %v658
  %v667 = vunpack.c.l.b16 %v659
  %v668 = vunpack.c.l.b16 %v660
  %v669 = vunpack.c.l.b16 %v661
  %v670 = vpack.c.b16 %v667, %v666
  %v671 = vpack.c.b16 %v669, %v668
  %v675 = vsel %vm109, %v657, 0
  %677 = vmatprep.subr.bf16.mxu0 0
  %678 = vmatpush1.bf16.msra.mxu0 %v670
  %679 = vmatprep.subr.bf16.mxu0 0
  %680 = vmatpush1.bf16.msra.mxu0 %v671
  %681 = vmatprep.subr.bf16.mxu0 0
  %682 = vmatpush1.bf16.msra.mxu0 0
  %683 = vmatprep.subr.bf16.mxu0 0
  %684 = vmatpush1.bf16.msra.mxu0 0
  %685 = vmatprep.subr.bf16.mxu0 0
  %686 = vmatpush1.bf16.msra.mxu0 0
  %687 = vmatprep.subr.bf16.mxu0 0
  %688 = vmatpush1.bf16.msra.mxu0 0
  %689 = vmatprep.subr.bf16.mxu0 0
  %690 = vmatpush1.bf16.msra.mxu0 0
  %691 = vmatprep.subr.bf16.mxu0 0
  %692 = vmatpush1.bf16.msra.mxu0 0
  %693 = vmatprep.subr.bf16.mxu0 0
  %694 = vmatpush1.bf16.msra.mxu0 0
  %695 = vmatprep.subr.bf16.mxu0 0
  %696 = vmatpush1.bf16.msra.mxu0 0
  %697 = vmatprep.subr.bf16.mxu0 0
  %698 = vmatpush1.bf16.msra.mxu0 0
  %699 = vmatprep.subr.bf16.mxu0 0
  %700 = vmatpush1.bf16.msra.mxu0 0
  %701 = vmatprep.subr.bf16.mxu0 0
  %702 = vmatpush1.bf16.msra.mxu0 0
  %703 = vmatprep.subr.bf16.mxu0 0
  %704 = vmatpush1.bf16.msra.mxu0 0
  %705 = vmatprep.subr.bf16.mxu0 0
  %706 = vmatpush1.bf16.msra.mxu0 0
  %707 = vmatprep.subr.bf16.mxu0 0
  %708 = vmatpush1.bf16.msra.mxu0 0
  %709 = vmatprep.mubr.bf16.mxu0 0
  %710 = vmatmul.mubr.bf16.gmra.mrb[0].mxu0 %v675
  %v711 = vpop.f32.mrb[0].mxu0
  %v712 = vadd.f32 0.0, %v711
  %v713 = vpop.f32.mrb[0].mxu0
  %v714 = vpop.f32.mrb[0].mxu0
  %v715 = vpop.f32.mrb[0].mxu0
  %716 = vdwg.mxu0
  %v717 = vadd.f32 %v656, %v712
  %v718 = vxor.u32 %v717, 2147483648
  %v719 = vmul.f32 %v718, 1.442695
  %v720 = vpow.pop %v719
  %v721 = vadd.f32 %v720, 1.0
  %v722 = vrcp.pop %v721
  %v723 = vmul.f32 1.0, %v722
  %v724 = vtanh.pop %v717
  %726 = vrot.lane.b32.xlu0 %v654, 32
  %v727 = vpop.permute.xlu0 %726
  %v729 = vmul.f32 %v723, %v727
  %731 = vrot.lane.b32.xlu0 %v724, 32
  %v732 = vpop.permute.xlu0 %731
  %v734 = vmul.f32 %v723, %v732
  %736 = vrot.lane.b32.xlu0 %v734, 32
  %v737 = vpop.permute.xlu0 %736
  %v739 = vadd.f32 %v729, %v737
  %v740 = vtanh.pop %v739
  %742 = vrot.lane.b32.xlu0 %v740, 32
  %v743 = vpop.permute.xlu0 %742
  %v745 = vmul.f32 %v723, %v743
  %747 = vrot.lane.b32.xlu0 %v745, 64
  %v748 = vpop.permute.xlu0 %747
  %750 = vst.msk [vmem:[#allocation3] sm:$0xf] %vm281, %v748
  %752 = vrot.lane.b32.xlu0 %v739, 96
  %v753 = vpop.permute.xlu0 %752
  %755 = vst.msk [vmem:[#allocation4] sm:$0xf] %vm281, %v753
  %v756 = vpack.c.bf16 %v745, %v745
  %v759 = vunpack.c.l.s4 1983009808
  %v760 = vunpack.c.0.s8 %v759
  %v761 = vlaneseq
  %v762 = vshrl.u32 %v761, 7
  %v763 = vsub.s32 %v760, %v762
  %v764 = vrot.slane %v756, %v763
  %765 = vrot.lane.b32.xlu0 %v764, 64
  %v766 = vpop.permute.xlu0 %765
  %s768 = scalar_lea.vmem %s6, 8
  %769 = vst.msk [vmem:[%s768] sm:$0x3] %vm300, %v766
  %v770 = vld [vmem:[#allocation3] sm:$0xf]
  %v771 = vld [vmem:[#allocation4] sm:$0xf]
  %s772 = scalar_lea.vmem [#allocation2], 20
  %v773 = vld [vmem:[%s772] sm:$0xf]
  %v774 = vpack.c.bf16 %v770, %v770
  %v775 = vld [vmem:[%s4] sm:$0xf]
  %v776 = vld [vmem:[%s4 + $0x4] sm:$0xf]
  %v777 = vld [vmem:[%s4 + $0x8] sm:$0xf]
  %v778 = vld [vmem:[%s4 + $0xc] sm:$0xf]
  %v783 = vunpack.c.l.b16 %v775
  %v784 = vunpack.c.l.b16 %v776
  %v785 = vunpack.c.l.b16 %v777
  %v786 = vunpack.c.l.b16 %v778
  %v787 = vpack.c.b16 %v784, %v783
  %v788 = vpack.c.b16 %v786, %v785
  %v792 = vsel %vm109, %v774, 0
  %794 = vmatprep.subr.bf16.mxu0 0
  %795 = vmatpush1.bf16.msra.mxu0 %v787
  %796 = vmatprep.subr.bf16.mxu0 0
  %797 = vmatpush1.bf16.msra.mxu0 %v788
  %798 = vmatprep.subr.bf16.mxu0 0
  %799 = vmatpush1.bf16.msra.mxu0 0
  %800 = vmatprep.subr.bf16.mxu0 0
  %801 = vmatpush1.bf16.msra.mxu0 0
  %802 = vmatprep.subr.bf16.mxu0 0
  %803 = vmatpush1.bf16.msra.mxu0 0
  %804 = vmatprep.subr.bf16.mxu0 0
  %805 = vmatpush1.bf16.msra.mxu0 0
  %806 = vmatprep.subr.bf16.mxu0 0
  %807 = vmatpush1.bf16.msra.mxu0 0
  %808 = vmatprep.subr.bf16.mxu0 0
  %809 = vmatpush1.bf16.msra.mxu0 0
  %810 = vmatprep.subr.bf16.mxu0 0
  %811 = vmatpush1.bf16.msra.mxu0 0
  %812 = vmatprep.subr.bf16.mxu0 0
  %813 = vmatpush1.bf16.msra.mxu0 0
  %814 = vmatprep.subr.bf16.mxu0 0
  %815 = vmatpush1.bf16.msra.mxu0 0
  %816 = vmatprep.subr.bf16.mxu0 0
  %817 = vmatpush1.bf16.msra.mxu0 0
  %818 = vmatprep.subr.bf16.mxu0 0
  %819 = vmatpush1.bf16.msra.mxu0 0
  %820 = vmatprep.subr.bf16.mxu0 0
  %821 = vmatpush1.bf16.msra.mxu0 0
  %822 = vmatprep.subr.bf16.mxu0 0
  %823 = vmatpush1.bf16.msra.mxu0 0
  %824 = vmatprep.subr.bf16.mxu0 0
  %825 = vmatpush1.bf16.msra.mxu0 0
  %826 = vmatprep.mubr.bf16.mxu0 0
  %827 = vmatmul.mubr.bf16.gmra.mrb[0].mxu0 %v792
  %v828 = vpop.f32.mrb[0].mxu0
  %v829 = vadd.f32 0.0, %v828
  %v830 = vpop.f32.mrb[0].mxu0
  %v831 = vpop.f32.mrb[0].mxu0
  %v832 = vpop.f32.mrb[0].mxu0
  %833 = vdwg.mxu0
  %v834 = vadd.f32 %v773, %v829
  %v835 = vxor.u32 %v834, 2147483648
  %v836 = vmul.f32 %v835, 1.442695
  %v837 = vpow.pop %v836
  %v838 = vadd.f32 %v837, 1.0
  %v839 = vrcp.pop %v838
  %v840 = vmul.f32 1.0, %v839
  %v841 = vtanh.pop %v834
  %843 = vrot.lane.b32.xlu0 %v771, 32
  %v844 = vpop.permute.xlu0 %843
  %v846 = vmul.f32 %v840, %v844
  %848 = vrot.lane.b32.xlu0 %v841, 32
  %v849 = vpop.permute.xlu0 %848
  %v851 = vmul.f32 %v840, %v849
  %853 = vrot.lane.b32.xlu0 %v851, 32
  %v854 = vpop.permute.xlu0 %853
  %v856 = vadd.f32 %v846, %v854
  %v857 = vtanh.pop %v856
  %859 = vrot.lane.b32.xlu0 %v857, 32
  %v860 = vpop.permute.xlu0 %859
  %v862 = vmul.f32 %v840, %v860
  %864 = vrot.lane.b32.xlu0 %v862, 64
  %v865 = vpop.permute.xlu0 %864
  %867 = vst.msk [vmem:[#allocation3] sm:$0xf] %vm281, %v865
  %869 = vrot.lane.b32.xlu0 %v856, 96
  %v870 = vpop.permute.xlu0 %869
  %872 = vst.msk [vmem:[#allocation4] sm:$0xf] %vm281, %v870
  %v873 = vpack.c.bf16 %v862, %v862
  %v876 = vunpack.c.l.s4 1983009808
  %v877 = vunpack.c.0.s8 %v876
  %v878 = vlaneseq
  %v879 = vshrl.u32 %v878, 7
  %v880 = vsub.s32 %v877, %v879
  %v881 = vrot.slane %v873, %v880
  %882 = vrot.lane.b32.xlu0 %v881, 64
  %v883 = vpop.permute.xlu0 %882
  %s885 = scalar_lea.vmem %s6, 10
  %886 = vst.msk [vmem:[%s885] sm:$0x3] %vm300, %v883
  %v887 = vld [vmem:[#allocation3] sm:$0xf]
  %v888 = vld [vmem:[#allocation4] sm:$0xf]
  %s889 = scalar_lea.vmem [#allocation2], 24
  %v890 = vld [vmem:[%s889] sm:$0xf]
  %v891 = vpack.c.bf16 %v887, %v887
  %v892 = vld [vmem:[%s4] sm:$0xf]
  %v893 = vld [vmem:[%s4 + $0x4] sm:$0xf]
  %v894 = vld [vmem:[%s4 + $0x8] sm:$0xf]
  %v895 = vld [vmem:[%s4 + $0xc] sm:$0xf]
  %v900 = vunpack.c.l.b16 %v892
  %v901 = vunpack.c.l.b16 %v893
  %v902 = vunpack.c.l.b16 %v894
  %v903 = vunpack.c.l.b16 %v895
  %v904 = vpack.c.b16 %v901, %v900
  %v905 = vpack.c.b16 %v903, %v902
  %v909 = vsel %vm109, %v891, 0
  %911 = vmatprep.subr.bf16.mxu0 0
  %912 = vmatpush1.bf16.msra.mxu0 %v904
  %913 = vmatprep.subr.bf16.mxu0 0
  %914 = vmatpush1.bf16.msra.mxu0 %v905
  %915 = vmatprep.subr.bf16.mxu0 0
  %916 = vmatpush1.bf16.msra.mxu0 0
  %917 = vmatprep.subr.bf16.mxu0 0
  %918 = vmatpush1.bf16.msra.mxu0 0
  %919 = vmatprep.subr.bf16.mxu0 0
  %920 = vmatpush1.bf16.msra.mxu0 0
  %921 = vmatprep.subr.bf16.mxu0 0
  %922 = vmatpush1.bf16.msra.mxu0 0
  %923 = vmatprep.subr.bf16.mxu0 0
  %924 = vmatpush1.bf16.msra.mxu0 0
  %925 = vmatprep.subr.bf16.mxu0 0
  %926 = vmatpush1.bf16.msra.mxu0 0
  %927 = vmatprep.subr.bf16.mxu0 0
  %928 = vmatpush1.bf16.msra.mxu0 0
  %929 = vmatprep.subr.bf16.mxu0 0
  %930 = vmatpush1.bf16.msra.mxu0 0
  %931 = vmatprep.subr.bf16.mxu0 0
  %932 = vmatpush1.bf16.msra.mxu0 0
  %933 = vmatprep.subr.bf16.mxu0 0
  %934 = vmatpush1.bf16.msra.mxu0 0
  %935 = vmatprep.subr.bf16.mxu0 0
  %936 = vmatpush1.bf16.msra.mxu0 0
  %937 = vmatprep.subr.bf16.mxu0 0
  %938 = vmatpush1.bf16.msra.mxu0 0
  %939 = vmatprep.subr.bf16.mxu0 0
  %940 = vmatpush1.bf16.msra.mxu0 0
  %941 = vmatprep.subr.bf16.mxu0 0
  %942 = vmatpush1.bf16.msra.mxu0 0
  %943 = vmatprep.mubr.bf16.mxu0 0
  %944 = vmatmul.mubr.bf16.gmra.mrb[0].mxu0 %v909
  %v945 = vpop.f32.mrb[0].mxu0
  %v946 = vadd.f32 0.0, %v945
  %v947 = vpop.f32.mrb[0].mxu0
  %v948 = vpop.f32.mrb[0].mxu0
  %v949 = vpop.f32.mrb[0].mxu0
  %950 = vdwg.mxu0
  %v951 = vadd.f32 %v890, %v946
  %v952 = vxor.u32 %v951, 2147483648
  %v953 = vmul.f32 %v952, 1.442695
  %v954 = vpow.pop %v953
  %v955 = vadd.f32 %v954, 1.0
  %v956 = vrcp.pop %v955
  %v957 = vmul.f32 1.0, %v956
  %v958 = vtanh.pop %v951
  %960 = vrot.lane.b32.xlu0 %v888, 32
  %v961 = vpop.permute.xlu0 %960
  %v963 = vmul.f32 %v957, %v961
  %965 = vrot.lane.b32.xlu0 %v958, 32
  %v966 = vpop.permute.xlu0 %965
  %v968 = vmul.f32 %v957, %v966
  %970 = vrot.lane.b32.xlu0 %v968, 32
  %v971 = vpop.permute.xlu0 %970
  %v973 = vadd.f32 %v963, %v971
  %v974 = vtanh.pop %v973
  %976 = vrot.lane.b32.xlu0 %v974, 32
  %v977 = vpop.permute.xlu0 %976
  %v979 = vmul.f32 %v957, %v977
  %981 = vrot.lane.b32.xlu0 %v979, 64
  %v982 = vpop.permute.xlu0 %981
  %984 = vst.msk [vmem:[#allocation3] sm:$0xf] %vm281, %v982
  %986 = vrot.lane.b32.xlu0 %v973, 96
  %v987 = vpop.permute.xlu0 %986
  %989 = vst.msk [vmem:[#allocation4] sm:$0xf] %vm281, %v987
  %v990 = vpack.c.bf16 %v979, %v979
  %v993 = vunpack.c.l.s4 1983009808
  %v994 = vunpack.c.0.s8 %v993
  %v995 = vlaneseq
  %v996 = vshrl.u32 %v995, 7
  %v997 = vsub.s32 %v994, %v996
  %v998 = vrot.slane %v990, %v997
  %999 = vrot.lane.b32.xlu0 %v998, 64
  %v1000 = vpop.permute.xlu0 %999
  %s1002 = scalar_lea.vmem %s6, 12
  %1003 = vst.msk [vmem:[%s1002] sm:$0x3] %vm300, %v1000
  %v1004 = vld [vmem:[#allocation3] sm:$0xf]
  %v1005 = vld [vmem:[#allocation4] sm:$0xf]
  %s1006 = scalar_lea.vmem [#allocation2], 28
  %v1007 = vld [vmem:[%s1006] sm:$0xf]
  %v1008 = vpack.c.bf16 %v1004, %v1004
  %v1009 = vld [vmem:[%s4] sm:$0xf]
  %v1010 = vld [vmem:[%s4 + $0x4] sm:$0xf]
  %v1011 = vld [vmem:[%s4 + $0x8] sm:$0xf]
  %v1012 = vld [vmem:[%s4 + $0xc] sm:$0xf]
  %v1017 = vunpack.c.l.b16 %v1009
  %v1018 = vunpack.c.l.b16 %v1010
  %v1019 = vunpack.c.l.b16 %v1011
  %v1020 = vunpack.c.l.b16 %v1012
  %v1021 = vpack.c.b16 %v1018, %v1017
  %v1022 = vpack.c.b16 %v1020, %v1019
  %v1026 = vsel %vm109, %v1008, 0
  %1028 = vmatprep.subr.bf16.mxu0 0
  %1029 = vmatpush1.bf16.msra.mxu0 %v1021
  %1030 = vmatprep.subr.bf16.mxu0 0
  %1031 = vmatpush1.bf16.msra.mxu0 %v1022
  %1032 = vmatprep.subr.bf16.mxu0 0
  %1033 = vmatpush1.bf16.msra.mxu0 0
  %1034 = vmatprep.subr.bf16.mxu0 0
  %1035 = vmatpush1.bf16.msra.mxu0 0
  %1036 = vmatprep.subr.bf16.mxu0 0
  %1037 = vmatpush1.bf16.msra.mxu0 0
  %1038 = vmatprep.subr.bf16.mxu0 0
  %1039 = vmatpush1.bf16.msra.mxu0 0
  %1040 = vmatprep.subr.bf16.mxu0 0
  %1041 = vmatpush1.bf16.msra.mxu0 0
  %1042 = vmatprep.subr.bf16.mxu0 0
  %1043 = vmatpush1.bf16.msra.mxu0 0
  %1044 = vmatprep.subr.bf16.mxu0 0
  %1045 = vmatpush1.bf16.msra.mxu0 0
  %1046 = vmatprep.subr.bf16.mxu0 0
  %1047 = vmatpush1.bf16.msra.mxu0 0
  %1048 = vmatprep.subr.bf16.mxu0 0
  %1049 = vmatpush1.bf16.msra.mxu0 0
  %1050 = vmatprep.subr.bf16.mxu0 0
  %1051 = vmatpush1.bf16.msra.mxu0 0
  %1052 = vmatprep.subr.bf16.mxu0 0
  %1053 = vmatpush1.bf16.msra.mxu0 0
  %1054 = vmatprep.subr.bf16.mxu0 0
  %1055 = vmatpush1.bf16.msra.mxu0 0
  %1056 = vmatprep.subr.bf16.mxu0 0
  %1057 = vmatpush1.bf16.msra.mxu0 0
  %1058 = vmatprep.subr.bf16.mxu0 0
  %1059 = vmatpush1.bf16.msra.mxu0 0
  %1060 = vmatprep.mubr.bf16.mxu0 0
  %1061 = vmatmul.mubr.bf16.gmra.mrb[0].mxu0 %v1026
  %v1062 = vpop.f32.mrb[0].mxu0
  %v1063 = vadd.f32 0.0, %v1062
  %v1064 = vpop.f32.mrb[0].mxu0
  %v1065 = vpop.f32.mrb[0].mxu0
  %v1066 = vpop.f32.mrb[0].mxu0
  %1067 = vdwg.mxu0
  %v1068 = vadd.f32 %v1007, %v1063
  %v1069 = vxor.u32 %v1068, 2147483648
  %v1070 = vmul.f32 %v1069, 1.442695
  %v1071 = vpow.pop %v1070
  %v1072 = vadd.f32 %v1071, 1.0
  %v1073 = vrcp.pop %v1072
  %v1074 = vmul.f32 1.0, %v1073
  %v1075 = vtanh.pop %v1068
  %1077 = vrot.lane.b32.xlu0 %v1005, 32
  %v1078 = vpop.permute.xlu0 %1077
  %v1080 = vmul.f32 %v1074, %v1078
  %1082 = vrot.lane.b32.xlu0 %v1075, 32
  %v1083 = vpop.permute.xlu0 %1082
  %v1085 = vmul.f32 %v1074, %v1083
  %1087 = vrot.lane.b32.xlu0 %v1085, 32
  %v1088 = vpop.permute.xlu0 %1087
  %v1090 = vadd.f32 %v1080, %v1088
  %v1091 = vtanh.pop %v1090
  %1093 = vrot.lane.b32.xlu0 %v1091, 32
  %v1094 = vpop.permute.xlu0 %1093
  %v1096 = vmul.f32 %v1074, %v1094
  %1098 = vrot.lane.b32.xlu0 %v1096, 64
  %v1099 = vpop.permute.xlu0 %1098
  %1101 = vst.msk [vmem:[#allocation3] sm:$0xf] %vm281, %v1099
  %1103 = vrot.lane.b32.xlu0 %v1090, 96
  %v1104 = vpop.permute.xlu0 %1103
  %1106 = vst.msk [vmem:[#allocation4] sm:$0xf] %vm281, %v1104
  %v1107 = vpack.c.bf16 %v1096, %v1096
  %v1110 = vunpack.c.l.s4 1983009808
  %v1111 = vunpack.c.0.s8 %v1110
  %v1112 = vlaneseq
  %v1113 = vshrl.u32 %v1112, 7
  %v1114 = vsub.s32 %v1111, %v1113
  %v1115 = vrot.slane %v1107, %v1114
  %1116 = vrot.lane.b32.xlu0 %v1115, 64
  %v1117 = vpop.permute.xlu0 %1116
  %s1119 = scalar_lea.vmem %s6, 14
  %1120 = vst.msk [vmem:[%s1119] sm:$0x3] %vm300, %v1117
  // Predicated region
  $region30: #{rnn_model_forward.3} parent=0 // pred_check
    %p1121 = pneg %p27
  $region31: #{rnn_model_forward.3} parent=0 // pred_check_branch
    %1123 = sbr.rel (%p1121) target = $region33
  $region32: #{rnn_model_forward.3} parent=0 // pred_region
    %v1124 = vld [vmem:[#allocation3] sm:$0xf]
    %1125 = vst.msk [vmem:[%s7] sm:$0xf] %vm281, %v1124
    %v1126 = vld [vmem:[#allocation4] sm:$0xf]
    %1127 = vst.msk [vmem:[%s8] sm:$0xf] %vm281, %v1126
  $region33: #{rnn_model_forward.3} parent=0 // pred_fallthru
    _
  // Predicated region
  $region34: #{rnn_model_forward.3} parent=0 // pred_check
    _
  $region35: #{rnn_model_forward.3} parent=0 // pred_check_branch
    %1129 = sbr.rel (0) target = $region37
  $region36: #{rnn_model_forward.3} parent=0 // pred_region
    _
  $region37: #{rnn_model_forward.3} parent=0 // pred_fallthru
    _
  // Predicated region
  $region38: #{rnn_model_forward.3} parent=0 // pred_check
    _
  $region39: #{rnn_model_forward.3} parent=0 // pred_check_branch
    %1131 = sbr.rel (0) target = $region41
  $region40: #{rnn_model_forward.3} parent=0 // pred_region
    _
  $region41: #{rnn_model_forward.3} parent=0 // pred_fallthru
    _
  // Predicated region
  $region42: #{rnn_model_forward.3} parent=0 // pred_check
    _
  $region43: #{rnn_model_forward.3} parent=0 // pred_check_branch
    %1133 = sbr.rel (0) target = $region45
  $region44: #{rnn_model_forward.3} parent=0 // pred_region
    _
  $region45: #{rnn_model_forward.3} parent=0 // pred_fallthru
    _
  // Predicated region
  $region46: #{rnn_model_forward.3} parent=0 // pred_check
    _
  $region47: #{rnn_model_forward.3} parent=0 // pred_check_branch
    %1135 = sbr.rel (0) target = $region49
  $region48: #{rnn_model_forward.3} parent=0 // pred_region
    _
  $region49: #{rnn_model_forward.3} parent=0 // pred_fallthru
    _
  // Predicated region
  $region50: #{rnn_model_forward.3} parent=0 // pred_check
    _
  $region51: #{rnn_model_forward.3} parent=0 // pred_check_branch
    %1137 = sbr.rel (0) target = $region53
  $region52: #{rnn_model_forward.3} parent=0 // pred_region
    _
  $region53: #{rnn_model_forward.3} parent=0 // pred_fallthru
    _
  // Predicated region
  $region54: #{rnn_model_forward.3} parent=0 // pred_check
    _
  $region55: #{rnn_model_forward.3} parent=0 // pred_check_branch
    %1139 = sbr.rel (0) target = $region57
  $region56: #{rnn_model_forward.3} parent=0 // pred_region
    _
  $region57: #{rnn_model_forward.3} parent=0 // pred_fallthru
    _

</llo_original>
